<compile_context>
chip_gen: v5e
topology: v5e:2x2
jax: 0.10.0
libtpu: 0.0.40
codegen_flags: <defaults>
</compile_context>

<pallas_src>
import functools

import jax
import jax.numpy as jnp
from jax.experimental import pallas as pl
from jax.experimental.pallas import tpu as pltpu


def _sigmoid(v):
    # exp on the EUP, reciprocal on the EUP (approx vrcp) -> VALU stays free.
    return pl.reciprocal(1.0 + jnp.exp(-v), approx=True)


def _swish(v):
    return v * _sigmoid(v)


def _mbconv_kernel(x_ref, we_ref, be_ref, wd_ref, bd_ref,
                   wsr_ref, bsr_ref, wse_ref, bse_ref,
                   wp_ref, bp_ref, o_ref, pad_ref,
                   *, ksize, pad_lo, apply_residual):
    # x_ref block: (1, H, W, Cin)
    H, W, Cin = x_ref.shape[1], x_ref.shape[2], x_ref.shape[3]
    Cexp = we_ref.shape[1]
    Cout = wp_ref.shape[1]

    x = x_ref[0]                                   # (H, W, Cin) f32
    xf = x.reshape(H * W, Cin)

    # ---- expand 1x1 conv (+ folded BN0) + swish : bf16 MXU matmul, f32 acc ----
    h = jnp.dot(xf.astype(jnp.bfloat16), we_ref[...],
                preferred_element_type=jnp.float32) + be_ref[...]       # (H*W, Cexp)
    h = _swish(h)

    # ---- depthwise k x k conv, stride 1, SAME padding (+ folded BN1) ----
    pad_ref[...] = jnp.zeros_like(pad_ref)
    pad_ref[pad_lo:pad_lo + H, pad_lo:pad_lo + W, :] = h.reshape(H, W, Cexp)
    wd = wd_ref[...]                                                    # (k, k, Cexp) f32
    acc = jnp.zeros((H, W, Cexp), jnp.float32)
    for dh in range(ksize):                        # 9 unrolled shifted FMAs
        for dw in range(ksize):
            acc = acc + pad_ref[dh:dh + H, dw:dw + W, :] * wd[dh, dw]
    d = _swish(acc + bd_ref[...])                                       # (H, W, Cexp)
    d2 = d.reshape(H * W, Cexp)

    # ---- squeeze & excitation (tiny, f32) ----
    pooled = jnp.sum(d2, axis=0, keepdims=True) * (1.0 / (H * W))       # (1, Cexp)
    sq = jnp.dot(pooled, wsr_ref[...],
                 preferred_element_type=jnp.float32) + bsr_ref[...]     # (1, Csq)
    sq = _swish(sq)
    ex = jnp.dot(sq, wse_ref[...],
                 preferred_element_type=jnp.float32) + bse_ref[...]     # (1, Cexp)
    gate = _sigmoid(ex)
    g = d2 * gate                                                       # (H*W, Cexp)

    # ---- project 1x1 conv (+ folded BN2) + residual : bf16 MXU matmul ----
    y = jnp.dot(g.astype(jnp.bfloat16), wp_ref[...],
                preferred_element_type=jnp.float32) + bp_ref[...]       # (H*W, Cout)
    if apply_residual:
        y = y + xf
    o_ref[0] = y.reshape(H, W, Cout).astype(o_ref.dtype)


def mbconv_forward(x, params, *, kernel_size, stride=1, id_skip=True):
    """x: (B, H, W, Cin) NHWC.  params: BN-folded weights from fold_params()."""
    B, H, W, Cin = x.shape
    Cexp = params["we"].shape[1]
    Csq = params["wsr"].shape[1]
    Cout = params["wp"].shape[1]

    # TODO(synk): strided (stride>1) SAME depthwise conv not implemented; the
    # residual-branch MBConv config used here has stride=1.
    assert stride == 1, "only stride=1 depthwise conv is implemented"
    pad_lo = (kernel_size - 1) // 2
    pad_total = kernel_size - 1
    apply_residual = bool(id_skip and stride == 1 and Cin == Cout)

    kernel = functools.partial(_mbconv_kernel, ksize=kernel_size,
                               pad_lo=pad_lo, apply_residual=apply_residual)

    return pl.pallas_call(
        kernel,
        out_shape=jax.ShapeDtypeStruct((B, H, W, Cout), x.dtype),
        grid_spec=pltpu.PrefetchScalarGridSpec(
            num_scalar_prefetch=0,
            grid=(B,),
            in_specs=[
                pl.BlockSpec((1, H, W, Cin), lambda b: (b, 0, 0, 0)),                  # x
                pl.BlockSpec((Cin, Cexp), lambda b: (0, 0)),                           # we (bf16)
                pl.BlockSpec((1, Cexp), lambda b: (0, 0)),                             # be
                pl.BlockSpec((kernel_size, kernel_size, Cexp), lambda b: (0, 0, 0)),   # wd
                pl.BlockSpec((1, Cexp), lambda b: (0, 0)),                             # bd
                pl.BlockSpec((Cexp, Csq), lambda b: (0, 0)),                           # wsr
                pl.BlockSpec((1, Csq), lambda b: (0, 0)),                              # bsr
                pl.BlockSpec((Csq, Cexp), lambda b: (0, 0)),                           # wse
                pl.BlockSpec((1, Cexp), lambda b: (0, 0)),                             # bse
                pl.BlockSpec((Cexp, Cout), lambda b: (0, 0)),                          # wp (bf16)
                pl.BlockSpec((1, Cout), lambda b: (0, 0)),                             # bp
            ],
            out_specs=pl.BlockSpec((1, H, W, Cout), lambda b: (b, 0, 0, 0)),
            scratch_shapes=[
                pltpu.VMEM((H + pad_total, W + pad_total, Cexp), jnp.float32),
            ],
        ),
        compiler_params=pltpu.CompilerParams(
            dimension_semantics=("parallel",)),
    )(x, params["we"], params["be"], params["wd"], params["bd"],
      params["wsr"], params["bsr"], params["wse"], params["bse"],
      params["wp"], params["bp"])


# ----------------------- parameters / BN folding / reference -----------------------

def init_params(key, *, cin, cexp, csq, cout, k):
    """Raw (unfolded) deterministic synthetic weights + eval-mode BN stats."""
    ks = jax.random.split(key, 8)

    def w(kk, shape, fan_in):
        return jax.random.normal(kk, shape, jnp.float32) * (2.0 / fan_in) ** 0.5

    def bn(kk, c):
        kg, kb, km, kv = jax.random.split(kk, 4)
        gamma = 1.0 + 0.1 * jax.random.normal(kg, (c,), jnp.float32)
        beta = 0.1 * jax.random.normal(kb, (c,), jnp.float32)
        mean = 0.1 * jax.random.normal(km, (c,), jnp.float32)
        var = 1.0 + 0.1 * jax.random.uniform(kv, (c,), jnp.float32)
        return gamma, beta, mean, var

    return {
        "w_expand": w(ks[0], (cin, cexp), cin),          # 1x1 expand, (in, out)
        "w_dw": w(ks[1], (k, k, cexp), k * k),           # depthwise, (kh, kw, C)
        "w_sr": w(ks[2], (cexp, csq), cexp),             # SE reduce
        "b_sr": 0.1 * jax.random.normal(ks[3], (1, csq), jnp.float32),
        "w_se": w(ks[4], (csq, cexp), csq),              # SE expand
        "b_se": 0.1 * jax.random.normal(ks[5], (1, cexp), jnp.float32),
        "w_proj": w(ks[6], (cexp, cout), cexp),          # 1x1 project
        "bn0": bn(ks[7], cexp),
        "bn1": bn(jax.random.fold_in(key, 100), cexp),
        "bn2": bn(jax.random.fold_in(key, 101), cout),
    }


def _fold_bn_into_conv(w, bn, eps):
    gamma, beta, mean, var = bn
    s = gamma / jnp.sqrt(var + eps)
    shape = (1,) * (w.ndim - 1) + (-1,)                  # out-channel is the last axis
    return w * s.reshape(shape), (beta - mean * s).reshape(1, -1)


def fold_params(raw, eps):
    """Fold eval-mode BN into conv weights; cast MXU matmul weights to bf16."""
    we, be = _fold_bn_into_conv(raw["w_expand"], raw["bn0"], eps)
    wd, bd = _fold_bn_into_conv(raw["w_dw"], raw["bn1"], eps)
    wp, bp = _fold_bn_into_conv(raw["w_proj"], raw["bn2"], eps)
    return {
        "we": we.astype(jnp.bfloat16), "be": be,
        "wd": wd, "bd": bd,
        "wsr": raw["w_sr"], "bsr": raw["b_sr"],
        "wse": raw["w_se"], "bse": raw["b_se"],
        "wp": wp.astype(jnp.bfloat16), "bp": bp,
    }


def reference_forward(x, p, *, k, eps):
    """Pure-JAX f32 reference mirroring MBConvBlock.forward (eval, stride=1,
    expand_ratio!=1, SE enabled, id_skip residual, drop_connect_rate=None)."""
    def bn_apply(v, bnp):
        g, b, m, var = bnp
        return (v - m) / jnp.sqrt(var + eps) * g + b

    def swish(v):
        return v * jax.nn.sigmoid(v)

    cexp = p["w_expand"].shape[1]
    h = jnp.einsum("bhwc,cd->bhwd", x, p["w_expand"])
    h = swish(bn_apply(h, p["bn0"]))
    wd = p["w_dw"].reshape(k, k, 1, cexp)                # HWIO, depthwise
    d = jax.lax.conv_general_dilated(
        h, wd, window_strides=(1, 1), padding="SAME",
        dimension_numbers=("NHWC", "HWIO", "NHWC"),
        feature_group_count=cexp)
    d = swish(bn_apply(d, p["bn1"]))
    pooled = d.mean(axis=(1, 2))                         # (B, Cexp)
    s = swish(pooled @ p["w_sr"] + p["b_sr"])
    gate = jax.nn.sigmoid(s @ p["w_se"] + p["b_se"])
    d = d * gate[:, None, None, :]
    y = jnp.einsum("bhwc,cd->bhwd", d, p["w_proj"])
    y = bn_apply(y, p["bn2"])
    return y + x                                         # id_skip residual


if __name__ == "__main__":
    # Small MBConv config: input_filters=32, expand_ratio=4 (Cexp=128 -> one full
    # lane), se_ratio=0.25 (Csq=8), output_filters=32, kernel=3, stride=1,
    # H=W=16, batch=2 (maps onto both v7x TensorCores).
    B, H, W = 2, 16, 16
    cin, expand_ratio, cout, k, se_ratio = 32, 4, 32, 3, 0.25
    cexp = cin * expand_ratio
    csq = max(1, int(cin * se_ratio))
    bn_eps = 1e-3

    key = jax.random.PRNGKey(0)
    kx, kp = jax.random.split(key)
    x = jax.random.normal(kx, (B, H, W, cin), jnp.float32)

    raw = init_params(kp, cin=cin, cexp=cexp, csq=csq, cout=cout, k=k)
    params = fold_params(raw, bn_eps)

    out = mbconv_forward(x, params, kernel_size=k, stride=1, id_skip=True)
    out = jax.block_until_ready(out)

    ref = reference_forward(x, raw, k=k, eps=bn_eps)
    assert out.shape == (B, H, W, cout)
    # bf16 MXU operands + approx-reciprocal sigmoid vs. the exact-f32 reference.
    assert jnp.allclose(out, ref, atol=5e-2, rtol=5e-2), (
        f"mismatch vs reference, max abs err {float(jnp.max(jnp.abs(out - ref)))}")

    print("KERNEL_OK")
</pallas_src>

<mosaic_0001>
module attributes {stable_mosaic.version = 11 : i64} {
  func.func @_mbconv_kernel(%arg0: i32, %arg1: memref<1x16x16x32xf32, #tpu.memory_space<vmem>>, %arg2: memref<32x128xbf16, #tpu.memory_space<vmem>>, %arg3: memref<1x128xf32, #tpu.memory_space<vmem>>, %arg4: memref<3x3x128xf32, #tpu.memory_space<vmem>>, %arg5: memref<1x128xf32, #tpu.memory_space<vmem>>, %arg6: memref<128x8xf32, #tpu.memory_space<vmem>>, %arg7: memref<1x8xf32, #tpu.memory_space<vmem>>, %arg8: memref<8x128xf32, #tpu.memory_space<vmem>>, %arg9: memref<1x128xf32, #tpu.memory_space<vmem>>, %arg10: memref<128x32xbf16, #tpu.memory_space<vmem>>, %arg11: memref<1x32xf32, #tpu.memory_space<vmem>>, %arg12: memref<1x16x16x32xf32, #tpu.memory_space<vmem>>, %arg13: memref<18x18x128xf32, #tpu.memory_space<vmem>>) attributes {dimension_semantics = [#tpu.dimension_semantics<parallel>], iteration_bounds = array<i64: 2>, scalar_prefetch = 0 : i64, scratch_operands = 1 : i64, tpu.core_type = #tpu.core_type<tc>, window_params = [{transform_indices = @transform_0, window_bounds = array<i64: 1, 16, 16, 32>}, {pipeline_mode = #tpu.pipeline_mode<synchronous>, transform_indices = @transform_1, window_bounds = array<i64: 32, 128>}, {pipeline_mode = #tpu.pipeline_mode<synchronous>, transform_indices = @transform_2, window_bounds = array<i64: 1, 128>}, {pipeline_mode = #tpu.pipeline_mode<synchronous>, transform_indices = @transform_3, window_bounds = array<i64: 3, 3, 128>}, {pipeline_mode = #tpu.pipeline_mode<synchronous>, transform_indices = @transform_4, window_bounds = array<i64: 1, 128>}, {pipeline_mode = #tpu.pipeline_mode<synchronous>, transform_indices = @transform_5, window_bounds = array<i64: 128, 8>}, {pipeline_mode = #tpu.pipeline_mode<synchronous>, transform_indices = @transform_6, window_bounds = array<i64: 1, 8>}, {pipeline_mode = #tpu.pipeline_mode<synchronous>, transform_indices = @transform_7, window_bounds = array<i64: 8, 128>}, {pipeline_mode = #tpu.pipeline_mode<synchronous>, transform_indices = @transform_8, window_bounds = array<i64: 1, 128>}, {pipeline_mode = #tpu.pipeline_mode<synchronous>, transform_indices = @transform_9, window_bounds = array<i64: 128, 32>}, {pipeline_mode = #tpu.pipeline_mode<synchronous>, transform_indices = @transform_10, window_bounds = array<i64: 1, 32>}, {transform_indices = @transform_11, window_bounds = array<i64: 1, 16, 16, 32>}]} {
    %c0 = arith.constant 0 : index
    %c0_0 = arith.constant 0 : index
    %c0_1 = arith.constant 0 : index
    %c0_2 = arith.constant 0 : index
    %0 = vector.load %arg1[%c0, %c0_0, %c0_1, %c0_2] : memref<1x16x16x32xf32, #tpu.memory_space<vmem>>, vector<1x16x16x32xf32>
    %1 = vector.shape_cast %0 : vector<1x16x16x32xf32> to vector<16x16x32xf32>
    %2 = vector.shape_cast %1 : vector<16x16x32xf32> to vector<256x32xf32>
    %3 = arith.truncf %2 : vector<256x32xf32> to vector<256x32xbf16>
    %c0_3 = arith.constant 0 : index
    %c0_4 = arith.constant 0 : index
    %4 = vector.load %arg2[%c0_3, %c0_4] : memref<32x128xbf16, #tpu.memory_space<vmem>>, vector<32x128xbf16>
    %cst = arith.constant dense<0.000000e+00> : vector<256x128xf32>
    %5 = tpu.matmul %3, %4, %cst {dimension_numbers = #tpu.dot_dimension_numbers<[1], [0], [0], [1], [0, 0, 1, 1], [], []>} : vector<256x32xbf16>, vector<32x128xbf16>, vector<256x128xf32> -> vector<256x128xf32>
    %c0_5 = arith.constant 0 : index
    %c0_6 = arith.constant 0 : index
    %6 = vector.load %arg3[%c0_5, %c0_6] : memref<1x128xf32, #tpu.memory_space<vmem>>, vector<1x128xf32>
    %7 = vector.broadcast %6 : vector<1x128xf32> to vector<256x128xf32>
    %8 = arith.addf %5, %7 : vector<256x128xf32>
    %cst_7 = arith.constant 0.000000e+00 : f32
    %9 = vector.broadcast %cst_7 : f32 to vector<256x128xf32>
    %10 = arith.subf %9, %8 : vector<256x128xf32>
    %11 = math.exp %10 : vector<256x128xf32>
    %cst_8 = arith.constant 1.000000e+00 : f32
    %12 = vector.broadcast %cst_8 : f32 to vector<256x128xf32>
    %13 = arith.addf %12, %11 : vector<256x128xf32>
    %14 = tpu.reciprocal %13 {approx = true} : vector<256x128xf32> -> vector<256x128xf32>
    %15 = arith.mulf %8, %14 : vector<256x128xf32>
    %cst_9 = arith.constant 0.000000e+00 : f32
    %16 = vector.broadcast %cst_9 : f32 to vector<18x18x128xf32>
    %c0_10 = arith.constant 0 : index
    %c0_11 = arith.constant 0 : index
    %c0_12 = arith.constant 0 : index
    %17 = vector.load %arg13[%c0_10, %c0_11, %c0_12] : memref<18x18x128xf32, #tpu.memory_space<vmem>>, vector<18x18x128xf32>
    tpu.vector_store %arg13[%c0_10, %c0_11, %c0_12], %16 {strides = array<i32>} : memref<18x18x128xf32, #tpu.memory_space<vmem>>, vector<18x18x128xf32>,
    %18 = vector.shape_cast %15 : vector<256x128xf32> to vector<16x16x128xf32>
    %c1 = arith.constant 1 : index
    %c1_13 = arith.constant 1 : index
    %c0_14 = arith.constant 0 : index
    %19 = vector.load %arg13[%c1, %c1_13, %c0_14] : memref<18x18x128xf32, #tpu.memory_space<vmem>>, vector<16x16x128xf32>
    tpu.vector_store %arg13[%c1, %c1_13, %c0_14], %18 {strides = array<i32>} : memref<18x18x128xf32, #tpu.memory_space<vmem>>, vector<16x16x128xf32>,
    %c0_15 = arith.constant 0 : index
    %c0_16 = arith.constant 0 : index
    %c0_17 = arith.constant 0 : index
    %20 = vector.load %arg4[%c0_15, %c0_16, %c0_17] : memref<3x3x128xf32, #tpu.memory_space<vmem>>, vector<3x3x128xf32>
    %cst_18 = arith.constant 0.000000e+00 : f32
    %21 = vector.broadcast %cst_18 : f32 to vector<16x16x128xf32>
    %c0_19 = arith.constant 0 : index
    %c0_20 = arith.constant 0 : index
    %c0_21 = arith.constant 0 : index
    %22 = vector.load %arg13[%c0_19, %c0_20, %c0_21] : memref<18x18x128xf32, #tpu.memory_space<vmem>>, vector<16x16x128xf32>
    %23 = vector.extract_strided_slice %20 {offsets = [0, 0, 0], sizes = [1, 1, 128], strides = [1, 1, 1]} : vector<3x3x128xf32> to vector<1x1x128xf32>
    %24 = vector.shape_cast %23 : vector<1x1x128xf32> to vector<128xf32>
    %25 = vector.shape_cast %24 : vector<128xf32> to vector<1x1x128xf32>
    %26 = vector.broadcast %25 : vector<1x1x128xf32> to vector<16x16x128xf32>
    %27 = arith.mulf %22, %26 : vector<16x16x128xf32>
    %28 = arith.addf %21, %27 : vector<16x16x128xf32>
    %c0_22 = arith.constant 0 : index
    %c1_23 = arith.constant 1 : index
    %c0_24 = arith.constant 0 : index
    %29 = vector.load %arg13[%c0_22, %c1_23, %c0_24] : memref<18x18x128xf32, #tpu.memory_space<vmem>>, vector<16x16x128xf32>
    %30 = vector.extract_strided_slice %20 {offsets = [0, 1, 0], sizes = [1, 1, 128], strides = [1, 1, 1]} : vector<3x3x128xf32> to vector<1x1x128xf32>
    %31 = vector.shape_cast %30 : vector<1x1x128xf32> to vector<128xf32>
    %32 = vector.shape_cast %31 : vector<128xf32> to vector<1x1x128xf32>
    %33 = vector.broadcast %32 : vector<1x1x128xf32> to vector<16x16x128xf32>
    %34 = arith.mulf %29, %33 : vector<16x16x128xf32>
    %35 = arith.addf %28, %34 : vector<16x16x128xf32>
    %c0_25 = arith.constant 0 : index
    %c2 = arith.constant 2 : index
    %c0_26 = arith.constant 0 : index
    %36 = vector.load %arg13[%c0_25, %c2, %c0_26] : memref<18x18x128xf32, #tpu.memory_space<vmem>>, vector<16x16x128xf32>
    %37 = vector.extract_strided_slice %20 {offsets = [0, 2, 0], sizes = [1, 1, 128], strides = [1, 1, 1]} : vector<3x3x128xf32> to vector<1x1x128xf32>
    %38 = vector.shape_cast %37 : vector<1x1x128xf32> to vector<128xf32>
    %39 = vector.shape_cast %38 : vector<128xf32> to vector<1x1x128xf32>
    %40 = vector.broadcast %39 : vector<1x1x128xf32> to vector<16x16x128xf32>
    %41 = arith.mulf %36, %40 : vector<16x16x128xf32>
    %42 = arith.addf %35, %41 : vector<16x16x128xf32>
    %c1_27 = arith.constant 1 : index
    %c0_28 = arith.constant 0 : index
    %c0_29 = arith.constant 0 : index
    %43 = vector.load %arg13[%c1_27, %c0_28, %c0_29] : memref<18x18x128xf32, #tpu.memory_space<vmem>>, vector<16x16x128xf32>
    %44 = vector.extract_strided_slice %20 {offsets = [1, 0, 0], sizes = [1, 1, 128], strides = [1, 1, 1]} : vector<3x3x128xf32> to vector<1x1x128xf32>
    %45 = vector.shape_cast %44 : vector<1x1x128xf32> to vector<128xf32>
    %46 = vector.shape_cast %45 : vector<128xf32> to vector<1x1x128xf32>
    %47 = vector.broadcast %46 : vector<1x1x128xf32> to vector<16x16x128xf32>
    %48 = arith.mulf %43, %47 : vector<16x16x128xf32>
    %49 = arith.addf %42, %48 : vector<16x16x128xf32>
    %c1_30 = arith.constant 1 : index
    %c1_31 = arith.constant 1 : index
    %c0_32 = arith.constant 0 : index
    %50 = vector.load %arg13[%c1_30, %c1_31, %c0_32] : memref<18x18x128xf32, #tpu.memory_space<vmem>>, vector<16x16x128xf32>
    %51 = vector.extract_strided_slice %20 {offsets = [1, 1, 0], sizes = [1, 1, 128], strides = [1, 1, 1]} : vector<3x3x128xf32> to vector<1x1x128xf32>
    %52 = vector.shape_cast %51 : vector<1x1x128xf32> to vector<128xf32>
    %53 = vector.shape_cast %52 : vector<128xf32> to vector<1x1x128xf32>
    %54 = vector.broadcast %53 : vector<1x1x128xf32> to vector<16x16x128xf32>
    %55 = arith.mulf %50, %54 : vector<16x16x128xf32>
    %56 = arith.addf %49, %55 : vector<16x16x128xf32>
    %c1_33 = arith.constant 1 : index
    %c2_34 = arith.constant 2 : index
    %c0_35 = arith.constant 0 : index
    %57 = vector.load %arg13[%c1_33, %c2_34, %c0_35] : memref<18x18x128xf32, #tpu.memory_space<vmem>>, vector<16x16x128xf32>
    %58 = vector.extract_strided_slice %20 {offsets = [1, 2, 0], sizes = [1, 1, 128], strides = [1, 1, 1]} : vector<3x3x128xf32> to vector<1x1x128xf32>
    %59 = vector.shape_cast %58 : vector<1x1x128xf32> to vector<128xf32>
    %60 = vector.shape_cast %59 : vector<128xf32> to vector<1x1x128xf32>
    %61 = vector.broadcast %60 : vector<1x1x128xf32> to vector<16x16x128xf32>
    %62 = arith.mulf %57, %61 : vector<16x16x128xf32>
    %63 = arith.addf %56, %62 : vector<16x16x128xf32>
    %c2_36 = arith.constant 2 : index
    %c0_37 = arith.constant 0 : index
    %c0_38 = arith.constant 0 : index
    %64 = vector.load %arg13[%c2_36, %c0_37, %c0_38] : memref<18x18x128xf32, #tpu.memory_space<vmem>>, vector<16x16x128xf32>
    %65 = vector.extract_strided_slice %20 {offsets = [2, 0, 0], sizes = [1, 1, 128], strides = [1, 1, 1]} : vector<3x3x128xf32> to vector<1x1x128xf32>
    %66 = vector.shape_cast %65 : vector<1x1x128xf32> to vector<128xf32>
    %67 = vector.shape_cast %66 : vector<128xf32> to vector<1x1x128xf32>
    %68 = vector.broadcast %67 : vector<1x1x128xf32> to vector<16x16x128xf32>
    %69 = arith.mulf %64, %68 : vector<16x16x128xf32>
    %70 = arith.addf %63, %69 : vector<16x16x128xf32>
    %c2_39 = arith.constant 2 : index
    %c1_40 = arith.constant 1 : index
    %c0_41 = arith.constant 0 : index
    %71 = vector.load %arg13[%c2_39, %c1_40, %c0_41] : memref<18x18x128xf32, #tpu.memory_space<vmem>>, vector<16x16x128xf32>
    %72 = vector.extract_strided_slice %20 {offsets = [2, 1, 0], sizes = [1, 1, 128], strides = [1, 1, 1]} : vector<3x3x128xf32> to vector<1x1x128xf32>
    %73 = vector.shape_cast %72 : vector<1x1x128xf32> to vector<128xf32>
    %74 = vector.shape_cast %73 : vector<128xf32> to vector<1x1x128xf32>
    %75 = vector.broadcast %74 : vector<1x1x128xf32> to vector<16x16x128xf32>
    %76 = arith.mulf %71, %75 : vector<16x16x128xf32>
    %77 = arith.addf %70, %76 : vector<16x16x128xf32>
    %c2_42 = arith.constant 2 : index
    %c2_43 = arith.constant 2 : index
    %c0_44 = arith.constant 0 : index
    %78 = vector.load %arg13[%c2_42, %c2_43, %c0_44] : memref<18x18x128xf32, #tpu.memory_space<vmem>>, vector<16x16x128xf32>
    %79 = vector.extract_strided_slice %20 {offsets = [2, 2, 0], sizes = [1, 1, 128], strides = [1, 1, 1]} : vector<3x3x128xf32> to vector<1x1x128xf32>
    %80 = vector.shape_cast %79 : vector<1x1x128xf32> to vector<128xf32>
    %81 = vector.shape_cast %80 : vector<128xf32> to vector<1x1x128xf32>
    %82 = vector.broadcast %81 : vector<1x1x128xf32> to vector<16x16x128xf32>
    %83 = arith.mulf %78, %82 : vector<16x16x128xf32>
    %84 = arith.addf %77, %83 : vector<16x16x128xf32>
    %c0_45 = arith.constant 0 : index
    %c0_46 = arith.constant 0 : index
    %85 = vector.load %arg5[%c0_45, %c0_46] : memref<1x128xf32, #tpu.memory_space<vmem>>, vector<1x128xf32>
    %86 = vector.shape_cast %85 : vector<1x128xf32> to vector<1x1x128xf32>
    %87 = vector.broadcast %86 : vector<1x1x128xf32> to vector<16x16x128xf32>
    %88 = arith.addf %84, %87 : vector<16x16x128xf32>
    %cst_47 = arith.constant 0.000000e+00 : f32
    %89 = vector.broadcast %cst_47 : f32 to vector<16x16x128xf32>
    %90 = arith.subf %89, %88 : vector<16x16x128xf32>
    %91 = math.exp %90 : vector<16x16x128xf32>
    %cst_48 = arith.constant 1.000000e+00 : f32
    %92 = vector.broadcast %cst_48 : f32 to vector<16x16x128xf32>
    %93 = arith.addf %92, %91 : vector<16x16x128xf32>
    %94 = tpu.reciprocal %93 {approx = true} : vector<16x16x128xf32> -> vector<16x16x128xf32>
    %95 = arith.mulf %88, %94 : vector<16x16x128xf32>
    %96 = vector.shape_cast %95 : vector<16x16x128xf32> to vector<256x128xf32>
    %cst_49 = arith.constant dense<0.000000e+00> : vector<128xf32>
    %97 = vector.multi_reduction <add>, %96, %cst_49 [0] : vector<256x128xf32> to vector<128xf32>
    %98 = vector.shape_cast %97 : vector<128xf32> to vector<1x128xf32>
    %cst_50 = arith.constant 3.906250e-03 : f32
    %99 = vector.broadcast %cst_50 : f32 to vector<1x128xf32>
    %100 = arith.mulf %98, %99 : vector<1x128xf32>
    %c0_51 = arith.constant 0 : index
    %c0_52 = arith.constant 0 : index
    %101 = vector.load %arg6[%c0_51, %c0_52] : memref<128x8xf32, #tpu.memory_space<vmem>>, vector<128x8xf32>
    %cst_53 = arith.constant dense<0.000000e+00> : vector<1x8xf32>
    %102 = tpu.matmul %100, %101, %cst_53 {dimension_numbers = #tpu.dot_dimension_numbers<[1], [0], [0], [1], [0, 0, 1, 1], [], []>} : vector<1x128xf32>, vector<128x8xf32>, vector<1x8xf32> -> vector<1x8xf32>
    %c0_54 = arith.constant 0 : index
    %c0_55 = arith.constant 0 : index
    %103 = vector.load %arg7[%c0_54, %c0_55] : memref<1x8xf32, #tpu.memory_space<vmem>>, vector<1x8xf32>
    %104 = arith.addf %102, %103 : vector<1x8xf32>
    %cst_56 = arith.constant 0.000000e+00 : f32
    %105 = vector.broadcast %cst_56 : f32 to vector<1x8xf32>
    %106 = arith.subf %105, %104 : vector<1x8xf32>
    %107 = math.exp %106 : vector<1x8xf32>
    %cst_57 = arith.constant 1.000000e+00 : f32
    %108 = vector.broadcast %cst_57 : f32 to vector<1x8xf32>
    %109 = arith.addf %108, %107 : vector<1x8xf32>
    %110 = tpu.reciprocal %109 {approx = true} : vector<1x8xf32> -> vector<1x8xf32>
    %111 = arith.mulf %104, %110 : vector<1x8xf32>
    %c0_58 = arith.constant 0 : index
    %c0_59 = arith.constant 0 : index
    %112 = vector.load %arg8[%c0_58, %c0_59] : memref<8x128xf32, #tpu.memory_space<vmem>>, vector<8x128xf32>
    %cst_60 = arith.constant dense<0.000000e+00> : vector<1x128xf32>
    %113 = tpu.matmul %111, %112, %cst_60 {dimension_numbers = #tpu.dot_dimension_numbers<[1], [0], [0], [1], [0, 0, 1, 1], [], []>} : vector<1x8xf32>, vector<8x128xf32>, vector<1x128xf32> -> vector<1x128xf32>
    %c0_61 = arith.constant 0 : index
    %c0_62 = arith.constant 0 : index
    %114 = vector.load %arg9[%c0_61, %c0_62] : memref<1x128xf32, #tpu.memory_space<vmem>>, vector<1x128xf32>
    %115 = arith.addf %113, %114 : vector<1x128xf32>
    %cst_63 = arith.constant 0.000000e+00 : f32
    %116 = vector.broadcast %cst_63 : f32 to vector<1x128xf32>
    %117 = arith.subf %116, %115 : vector<1x128xf32>
    %118 = math.exp %117 : vector<1x128xf32>
    %cst_64 = arith.constant 1.000000e+00 : f32
    %119 = vector.broadcast %cst_64 : f32 to vector<1x128xf32>
    %120 = arith.addf %119, %118 : vector<1x128xf32>
    %121 = tpu.reciprocal %120 {approx = true} : vector<1x128xf32> -> vector<1x128xf32>
    %122 = vector.broadcast %121 : vector<1x128xf32> to vector<256x128xf32>
    %123 = arith.mulf %96, %122 : vector<256x128xf32>
    %124 = arith.truncf %123 : vector<256x128xf32> to vector<256x128xbf16>
    %c0_65 = arith.constant 0 : index
    %c0_66 = arith.constant 0 : index
    %125 = vector.load %arg10[%c0_65, %c0_66] : memref<128x32xbf16, #tpu.memory_space<vmem>>, vector<128x32xbf16>
    %cst_67 = arith.constant dense<0.000000e+00> : vector<256x32xf32>
    %126 = tpu.matmul %124, %125, %cst_67 {dimension_numbers = #tpu.dot_dimension_numbers<[1], [0], [0], [1], [0, 0, 1, 1], [], []>} : vector<256x128xbf16>, vector<128x32xbf16>, vector<256x32xf32> -> vector<256x32xf32>
    %c0_68 = arith.constant 0 : index
    %c0_69 = arith.constant 0 : index
    %127 = vector.load %arg11[%c0_68, %c0_69] : memref<1x32xf32, #tpu.memory_space<vmem>>, vector<1x32xf32>
    %128 = vector.broadcast %127 : vector<1x32xf32> to vector<256x32xf32>
    %129 = arith.addf %126, %128 : vector<256x32xf32>
    %130 = arith.addf %129, %2 : vector<256x32xf32>
    %131 = vector.shape_cast %130 : vector<256x32xf32> to vector<16x16x32xf32>
    %c0_70 = arith.constant 0 : index
    %c0_71 = arith.constant 0 : index
    %c0_72 = arith.constant 0 : index
    %c0_73 = arith.constant 0 : index
    %132 = vector.load %arg12[%c0_70, %c0_71, %c0_72, %c0_73] : memref<1x16x16x32xf32, #tpu.memory_space<vmem>>, vector<1x16x16x32xf32>
    %133 = vector.shape_cast %132 : vector<1x16x16x32xf32> to vector<16x16x32xf32>
    %134 = vector.shape_cast %131 : vector<16x16x32xf32> to vector<1x16x16x32xf32>
    tpu.vector_store %arg12[%c0_70, %c0_71, %c0_72, %c0_73], %134 {strides = array<i32>} : memref<1x16x16x32xf32, #tpu.memory_space<vmem>>, vector<1x16x16x32xf32>,
    return
  }
  func.func @transform_0(%arg0: i32) -> (i32, i32, i32, i32) {
    %c0_i32 = arith.constant 0 : i32
    %c0_i32_0 = arith.constant 0 : i32
    %c0_i32_1 = arith.constant 0 : i32
    %c0_i32_2 = arith.constant 0 : i32
    return %arg0, %c0_i32, %c0_i32_0, %c0_i32_1 : i32, i32, i32, i32
  }
  func.func @transform_1(%arg0: i32) -> (i32, i32) {
    %c0_i32 = arith.constant 0 : i32
    %c0_i32_0 = arith.constant 0 : i32
    %c0_i32_1 = arith.constant 0 : i32
    return %c0_i32, %c0_i32_0 : i32, i32
  }
  func.func @transform_2(%arg0: i32) -> (i32, i32) {
    %c0_i32 = arith.constant 0 : i32
    %c0_i32_0 = arith.constant 0 : i32
    %c0_i32_1 = arith.constant 0 : i32
    return %c0_i32, %c0_i32_0 : i32, i32
  }
  func.func @transform_3(%arg0: i32) -> (i32, i32, i32) {
    %c0_i32 = arith.constant 0 : i32
    %c0_i32_0 = arith.constant 0 : i32
    %c0_i32_1 = arith.constant 0 : i32
    %c0_i32_2 = arith.constant 0 : i32
    return %c0_i32, %c0_i32_0, %c0_i32_1 : i32, i32, i32
  }
  func.func @transform_4(%arg0: i32) -> (i32, i32) {
    %c0_i32 = arith.constant 0 : i32
    %c0_i32_0 = arith.constant 0 : i32
    %c0_i32_1 = arith.constant 0 : i32
    return %c0_i32, %c0_i32_0 : i32, i32
  }
  func.func @transform_5(%arg0: i32) -> (i32, i32) {
    %c0_i32 = arith.constant 0 : i32
    %c0_i32_0 = arith.constant 0 : i32
    %c0_i32_1 = arith.constant 0 : i32
    return %c0_i32, %c0_i32_0 : i32, i32
  }
  func.func @transform_6(%arg0: i32) -> (i32, i32) {
    %c0_i32 = arith.constant 0 : i32
    %c0_i32_0 = arith.constant 0 : i32
    %c0_i32_1 = arith.constant 0 : i32
    return %c0_i32, %c0_i32_0 : i32, i32
  }
  func.func @transform_7(%arg0: i32) -> (i32, i32) {
    %c0_i32 = arith.constant 0 : i32
    %c0_i32_0 = arith.constant 0 : i32
    %c0_i32_1 = arith.constant 0 : i32
    return %c0_i32, %c0_i32_0 : i32, i32
  }
  func.func @transform_8(%arg0: i32) -> (i32, i32) {
    %c0_i32 = arith.constant 0 : i32
    %c0_i32_0 = arith.constant 0 : i32
    %c0_i32_1 = arith.constant 0 : i32
    return %c0_i32, %c0_i32_0 : i32, i32
  }
  func.func @transform_9(%arg0: i32) -> (i32, i32) {
    %c0_i32 = arith.constant 0 : i32
    %c0_i32_0 = arith.constant 0 : i32
    %c0_i32_1 = arith.constant 0 : i32
    return %c0_i32, %c0_i32_0 : i32, i32
  }
  func.func @transform_10(%arg0: i32) -> (i32, i32) {
    %c0_i32 = arith.constant 0 : i32
    %c0_i32_0 = arith.constant 0 : i32
    %c0_i32_1 = arith.constant 0 : i32
    return %c0_i32, %c0_i32_0 : i32, i32
  }
  func.func @transform_11(%arg0: i32) -> (i32, i32, i32, i32) {
    %c0_i32 = arith.constant 0 : i32
    %c0_i32_0 = arith.constant 0 : i32
    %c0_i32_1 = arith.constant 0 : i32
    %c0_i32_2 = arith.constant 0 : i32
    return %arg0, %c0_i32, %c0_i32_0, %c0_i32_1 : i32, i32, i32, i32
  }
}

</mosaic_0001>

<llo_original>
// kernel: tpu_custom_call.1
$region0: #{tpu_custom_call.1}
  #allocation0 [shape = 'u32[]', space=smem, size = 0x4, offset = 0x4, fixed_abs, tag = 'smem constant byte address 0x4 - core index']
  #allocation1 [shape = 'u32[72,128]{1,0:T(1,128)}', space=vmem, size = 0x9000, scoped, tag = 'internal scratch']
  #allocation2 [shape = 'f32[18,18,128]{2,1,0:T(8,128)}', space=vmem, size = 0x36000, scoped, tag = 'scratch operand']
  %s0 = inlined_call_operand.hbm [shape: f32[2,16,16,32], index: 0, kind: input, shape index: {}]
  %s1 = inlined_call_operand.vmem [shape: bf16[32,128], index: 1, kind: input, shape index: {}]
  %s2 = inlined_call_operand.vmem [shape: f32[1,128], index: 2, kind: input, shape index: {}]
  %s3 = inlined_call_operand.vmem [shape: f32[3,3,128], index: 3, kind: input, shape index: {}]
  %s4 = inlined_call_operand.vmem [shape: f32[1,128], index: 4, kind: input, shape index: {}]
  %s5 = inlined_call_operand.vmem [shape: f32[128,8], index: 5, kind: input, shape index: {}]
  %s6 = inlined_call_operand.vmem [shape: f32[1,8], index: 6, kind: input, shape index: {}]
  %s7 = inlined_call_operand.vmem [shape: f32[8,128], index: 7, kind: input, shape index: {}]
  %s8 = inlined_call_operand.vmem [shape: f32[1,128], index: 8, kind: input, shape index: {}]
  %s9 = inlined_call_operand.vmem [shape: bf16[128,32], index: 9, kind: input, shape index: {}]
  %s10 = inlined_call_operand.vmem [shape: f32[1,32], index: 10, kind: input, shape index: {}]
  %s11 = inlined_call_operand.hbm [shape: f32[2,16,16,32], index: 11, kind: output, shape index: {}]
  %s12 = sld [smem:[#allocation0]]
  $region81: #{tpu_custom_call.1} parent=0
    _
  %s14 = ssub.s32 1, %s12
  %s15 = scalar_select 0, %s14, %s12
  $region1: #{tpu_custom_call.1} parent=0
    #allocation3 [shape = 'u8[262144]{0}', space=vmem, size = 0x40000, scoped, tag = 'input window, operand 0']
    #allocation4 [shape = 's32[2]{0}', space=sflag, size = 0x8, scoped, tag = 'scoped memory for tpu_custom_call.1']
    #allocation5 [shape = 's32[2]{0}', space=sflag, size = 0x8, scoped, tag = 'scoped memory for tpu_custom_call.1']
    #allocation6 [shape = 'u8[262144]{0}', space=vmem, size = 0x40000, scoped, tag = 'output window, operand 0']
    %16 = vsyncpa [#allocation4], 0
    %s17 = scalar_lea.sflag [#allocation4], 1
    %18 = vsyncpa %s17, 0
    %19 = vsyncpa [#allocation5], 0
    %s20 = scalar_lea.sflag [#allocation5], 1
    %21 = vsyncpa %s20, 0
    loop: start=0, step=1, limit=4
    $region2: #{tpu_custom_call.1} parent=1 // loop_pre_header
      _
    $region3: #{tpu_custom_call.1} parent=1 // loop_header
      %s23 = sphi 0, %s27
      %p24 = scmp.ge.s32.totalorder %s23, 4
      %s33 = sphi 0, %s35
      %s36 = sphi 0, %s33
      %s37 = sphi 0, %s36
      %s53 = sphi 0, %s37
      %s57 = sphi 0, %s57
      %s59 = sphi 0, %s57
      %s60 = sphi 0, %s59
      %s74 = sphi 0, %s60
      %s78 = sphi 0, %s78
      %s80 = sphi 0, %s78
      %s81 = sphi 0, %s80
      %s95 = sphi 0, %s81
      %s99 = sphi 0, %s99
      %s101 = sphi 0, %s99
      %s102 = sphi 0, %s101
      %s116 = sphi 0, %s102
      %s120 = sphi 0, %s120
      %s122 = sphi 0, %s120
      %s123 = sphi 0, %s122
      %s137 = sphi 0, %s123
      %s141 = sphi 0, %s141
      %s143 = sphi 0, %s141
      %s144 = sphi 0, %s143
      %s158 = sphi 0, %s144
      %s162 = sphi 0, %s162
      %s164 = sphi 0, %s162
      %s165 = sphi 0, %s164
      %s179 = sphi 0, %s165
      %s183 = sphi 0, %s183
      %s185 = sphi 0, %s183
      %s186 = sphi 0, %s185
      %s200 = sphi 0, %s186
      %s204 = sphi 0, %s204
      %s206 = sphi 0, %s204
      %s207 = sphi 0, %s206
      %s221 = sphi 0, %s207
      %s225 = sphi 0, %s225
      %s227 = sphi 0, %s225
      %s228 = sphi 0, %s227
      %s242 = sphi 0, %s228
      %s246 = sphi 0, %s246
      %s248 = sphi 0, %s246
      %s249 = sphi 0, %s248
      %s263 = sphi 0, %s249
      %s269 = sphi 0, %s271
      %s272 = sphi 0, %s269
      %s273 = sphi 0, %s272
      %s289 = sphi 0, %s273
    $region4: #{tpu_custom_call.1} parent=1 // loop_header_branch
      %26 = sbr.rel (%p24) target = $region8
    $region5: #{tpu_custom_call.1} parent=1 // loop_body
      %s28 = ssub.s32 %s23, 1
      %s29 = ssub.s32 %s23, 2
      %s30 = sadd.s32 %s23, 1
      %s31 = ssub.s32 %s23, %s30
      %p32 = scmp.eq.s32.totalorder %s31, 0
      %s34 = sadd.s32 %s33, 1
      %s35 = scalar_select %p32, %s33, %s34
      %p38 = pneg %p32
      %p39 = scmp.eq.s32.totalorder %s23, 1
      %p40 = por %p38, %p39
      %p41 = scmp.ne.s32.totalorder %s33, %s36
      %p42 = scmp.eq.s32.totalorder %s23, 0
      %p43 = por %p41, %p42
      %p44 = scmp.ne.s32.totalorder %s33, %s36
      %p45 = scmp.eq.s32.totalorder %s28, 1
      %p46 = por %p44, %p45
      %p47 = scmp.ne.s32.totalorder %s36, %s37
      %p48 = scmp.eq.s32.totalorder %s28, 0
      %p49 = por %p47, %p48
      %p50 = scmp.ne.s32.totalorder %s36, %s37
      %p51 = scmp.eq.s32.totalorder %s29, 1
      %p52 = por %p50, %p51
      %p54 = scmp.ne.s32.totalorder %s37, %s53
      %p55 = scmp.eq.s32.totalorder %s29, 0
      %p56 = por %p54, %p55
      %s58 = sadd.s32 %s57, 1
      %p61 = scmp.eq.s32.totalorder %s23, 1
      %p62 = scmp.ne.s32.totalorder %s57, %s59
      %p63 = scmp.eq.s32.totalorder %s23, 0
      %p64 = por %p62, %p63
      %p65 = scmp.ne.s32.totalorder %s57, %s59
      %p66 = scmp.eq.s32.totalorder %s28, 1
      %p67 = por %p65, %p66
      %p68 = scmp.ne.s32.totalorder %s59, %s60
      %p69 = scmp.eq.s32.totalorder %s28, 0
      %p70 = por %p68, %p69
      %p71 = scmp.ne.s32.totalorder %s59, %s60
      %p72 = scmp.eq.s32.totalorder %s29, 1
      %p73 = por %p71, %p72
      %p75 = scmp.ne.s32.totalorder %s60, %s74
      %p76 = scmp.eq.s32.totalorder %s29, 0
      %p77 = por %p75, %p76
      %s79 = sadd.s32 %s78, 1
      %p82 = scmp.eq.s32.totalorder %s23, 1
      %p83 = scmp.ne.s32.totalorder %s78, %s80
      %p84 = scmp.eq.s32.totalorder %s23, 0
      %p85 = por %p83, %p84
      %p86 = scmp.ne.s32.totalorder %s78, %s80
      %p87 = scmp.eq.s32.totalorder %s28, 1
      %p88 = por %p86, %p87
      %p89 = scmp.ne.s32.totalorder %s80, %s81
      %p90 = scmp.eq.s32.totalorder %s28, 0
      %p91 = por %p89, %p90
      %p92 = scmp.ne.s32.totalorder %s80, %s81
      %p93 = scmp.eq.s32.totalorder %s29, 1
      %p94 = por %p92, %p93
      %p96 = scmp.ne.s32.totalorder %s81, %s95
      %p97 = scmp.eq.s32.totalorder %s29, 0
      %p98 = por %p96, %p97
      %s100 = sadd.s32 %s99, 1
      %p103 = scmp.eq.s32.totalorder %s23, 1
      %p104 = scmp.ne.s32.totalorder %s99, %s101
      %p105 = scmp.eq.s32.totalorder %s23, 0
      %p106 = por %p104, %p105
      %p107 = scmp.ne.s32.totalorder %s99, %s101
      %p108 = scmp.eq.s32.totalorder %s28, 1
      %p109 = por %p107, %p108
      %p110 = scmp.ne.s32.totalorder %s101, %s102
      %p111 = scmp.eq.s32.totalorder %s28, 0
      %p112 = por %p110, %p111
      %p113 = scmp.ne.s32.totalorder %s101, %s102
      %p114 = scmp.eq.s32.totalorder %s29, 1
      %p115 = por %p113, %p114
      %p117 = scmp.ne.s32.totalorder %s102, %s116
      %p118 = scmp.eq.s32.totalorder %s29, 0
      %p119 = por %p117, %p118
      %s121 = sadd.s32 %s120, 1
      %p124 = scmp.eq.s32.totalorder %s23, 1
      %p125 = scmp.ne.s32.totalorder %s120, %s122
      %p126 = scmp.eq.s32.totalorder %s23, 0
      %p127 = por %p125, %p126
      %p128 = scmp.ne.s32.totalorder %s120, %s122
      %p129 = scmp.eq.s32.totalorder %s28, 1
      %p130 = por %p128, %p129
      %p131 = scmp.ne.s32.totalorder %s122, %s123
      %p132 = scmp.eq.s32.totalorder %s28, 0
      %p133 = por %p131, %p132
      %p134 = scmp.ne.s32.totalorder %s122, %s123
      %p135 = scmp.eq.s32.totalorder %s29, 1
      %p136 = por %p134, %p135
      %p138 = scmp.ne.s32.totalorder %s123, %s137
      %p139 = scmp.eq.s32.totalorder %s29, 0
      %p140 = por %p138, %p139
      %s142 = sadd.s32 %s141, 1
      %p145 = scmp.eq.s32.totalorder %s23, 1
      %p146 = scmp.ne.s32.totalorder %s141, %s143
      %p147 = scmp.eq.s32.totalorder %s23, 0
      %p148 = por %p146, %p147
      %p149 = scmp.ne.s32.totalorder %s141, %s143
      %p150 = scmp.eq.s32.totalorder %s28, 1
      %p151 = por %p149, %p150
      %p152 = scmp.ne.s32.totalorder %s143, %s144
      %p153 = scmp.eq.s32.totalorder %s28, 0
      %p154 = por %p152, %p153
      %p155 = scmp.ne.s32.totalorder %s143, %s144
      %p156 = scmp.eq.s32.totalorder %s29, 1
      %p157 = por %p155, %p156
      %p159 = scmp.ne.s32.totalorder %s144, %s158
      %p160 = scmp.eq.s32.totalorder %s29, 0
      %p161 = por %p159, %p160
      %s163 = sadd.s32 %s162, 1
      %p166 = scmp.eq.s32.totalorder %s23, 1
      %p167 = scmp.ne.s32.totalorder %s162, %s164
      %p168 = scmp.eq.s32.totalorder %s23, 0
      %p169 = por %p167, %p168
      %p170 = scmp.ne.s32.totalorder %s162, %s164
      %p171 = scmp.eq.s32.totalorder %s28, 1
      %p172 = por %p170, %p171
      %p173 = scmp.ne.s32.totalorder %s164, %s165
      %p174 = scmp.eq.s32.totalorder %s28, 0
      %p175 = por %p173, %p174
      %p176 = scmp.ne.s32.totalorder %s164, %s165
      %p177 = scmp.eq.s32.totalorder %s29, 1
      %p178 = por %p176, %p177
      %p180 = scmp.ne.s32.totalorder %s165, %s179
      %p181 = scmp.eq.s32.totalorder %s29, 0
      %p182 = por %p180, %p181
      %s184 = sadd.s32 %s183, 1
      %p187 = scmp.eq.s32.totalorder %s23, 1
      %p188 = scmp.ne.s32.totalorder %s183, %s185
      %p189 = scmp.eq.s32.totalorder %s23, 0
      %p190 = por %p188, %p189
      %p191 = scmp.ne.s32.totalorder %s183, %s185
      %p192 = scmp.eq.s32.totalorder %s28, 1
      %p193 = por %p191, %p192
      %p194 = scmp.ne.s32.totalorder %s185, %s186
      %p195 = scmp.eq.s32.totalorder %s28, 0
      %p196 = por %p194, %p195
      %p197 = scmp.ne.s32.totalorder %s185, %s186
      %p198 = scmp.eq.s32.totalorder %s29, 1
      %p199 = por %p197, %p198
      %p201 = scmp.ne.s32.totalorder %s186, %s200
      %p202 = scmp.eq.s32.totalorder %s29, 0
      %p203 = por %p201, %p202
      %s205 = sadd.s32 %s204, 1
      %p208 = scmp.eq.s32.totalorder %s23, 1
      %p209 = scmp.ne.s32.totalorder %s204, %s206
      %p210 = scmp.eq.s32.totalorder %s23, 0
      %p211 = por %p209, %p210
      %p212 = scmp.ne.s32.totalorder %s204, %s206
      %p213 = scmp.eq.s32.totalorder %s28, 1
      %p214 = por %p212, %p213
      %p215 = scmp.ne.s32.totalorder %s206, %s207
      %p216 = scmp.eq.s32.totalorder %s28, 0
      %p217 = por %p215, %p216
      %p218 = scmp.ne.s32.totalorder %s206, %s207
      %p219 = scmp.eq.s32.totalorder %s29, 1
      %p220 = por %p218, %p219
      %p222 = scmp.ne.s32.totalorder %s207, %s221
      %p223 = scmp.eq.s32.totalorder %s29, 0
      %p224 = por %p222, %p223
      %s226 = sadd.s32 %s225, 1
      %p229 = scmp.eq.s32.totalorder %s23, 1
      %p230 = scmp.ne.s32.totalorder %s225, %s227
      %p231 = scmp.eq.s32.totalorder %s23, 0
      %p232 = por %p230, %p231
      %p233 = scmp.ne.s32.totalorder %s225, %s227
      %p234 = scmp.eq.s32.totalorder %s28, 1
      %p235 = por %p233, %p234
      %p236 = scmp.ne.s32.totalorder %s227, %s228
      %p237 = scmp.eq.s32.totalorder %s28, 0
      %p238 = por %p236, %p237
      %p239 = scmp.ne.s32.totalorder %s227, %s228
      %p240 = scmp.eq.s32.totalorder %s29, 1
      %p241 = por %p239, %p240
      %p243 = scmp.ne.s32.totalorder %s228, %s242
      %p244 = scmp.eq.s32.totalorder %s29, 0
      %p245 = por %p243, %p244
      %s247 = sadd.s32 %s246, 1
      %p250 = scmp.eq.s32.totalorder %s23, 1
      %p251 = scmp.ne.s32.totalorder %s246, %s248
      %p252 = scmp.eq.s32.totalorder %s23, 0
      %p253 = por %p251, %p252
      %p254 = scmp.ne.s32.totalorder %s246, %s248
      %p255 = scmp.eq.s32.totalorder %s28, 1
      %p256 = por %p254, %p255
      %p257 = scmp.ne.s32.totalorder %s248, %s249
      %p258 = scmp.eq.s32.totalorder %s28, 0
      %p259 = por %p257, %p258
      %p260 = scmp.ne.s32.totalorder %s248, %s249
      %p261 = scmp.eq.s32.totalorder %s29, 1
      %p262 = por %p260, %p261
      %p264 = scmp.ne.s32.totalorder %s249, %s263
      %p265 = scmp.eq.s32.totalorder %s29, 0
      %p266 = por %p264, %p265
      %s267 = ssub.s32 %s23, %s30
      %p268 = scmp.eq.s32.totalorder %s267, 0
      %s270 = sadd.s32 %s269, 1
      %s271 = scalar_select %p268, %s269, %s270
      %p274 = pneg %p268
      %p275 = scmp.eq.s32.totalorder %s23, 1
      %p276 = por %p274, %p275
      %p277 = scmp.ne.s32.totalorder %s269, %s272
      %p278 = scmp.eq.s32.totalorder %s23, 0
      %p279 = por %p277, %p278
      %p280 = scmp.ne.s32.totalorder %s269, %s272
      %p281 = scmp.eq.s32.totalorder %s28, 1
      %p282 = por %p280, %p281
      %p283 = scmp.ne.s32.totalorder %s272, %s273
      %p284 = scmp.eq.s32.totalorder %s28, 0
      %p285 = por %p283, %p284
      %p286 = scmp.ne.s32.totalorder %s272, %s273
      %p287 = scmp.eq.s32.totalorder %s29, 1
      %p288 = por %p286, %p287
      %p290 = scmp.ne.s32.totalorder %s273, %s289
      %p291 = scmp.eq.s32.totalorder %s29, 0
      %p292 = por %p290, %p291
      %p293 = scmp.le.s32.totalorder 1, %s23
      %p294 = scmp.lt.s32.totalorder %s23, 3
      %p295 = pnand %p293, %p294
      %p296 = pneg %p295
      // Predicated region
      $region9: #{tpu_custom_call.1} parent=5 // pred_check
        _
      $region10: #{tpu_custom_call.1} parent=5 // pred_check_branch
        %298 = sbr.rel (%p295) target = $region12
      $region11: #{tpu_custom_call.1} parent=5 // pred_region
        %s299 = ssub.s32 %s23, 1
        // Predicated region
        $region13: #{tpu_custom_call.1} parent=11 // pred_check
          %p300 = pneg %p70
        $region14: #{tpu_custom_call.1} parent=11 // pred_check_branch
          %302 = sbr.rel (%p300) target = $region16
        $region15: #{tpu_custom_call.1} parent=11 // pred_region
          _
        $region16: #{tpu_custom_call.1} parent=11 // pred_fallthru
          _
        // Predicated region
        $region17: #{tpu_custom_call.1} parent=11 // pred_check
          %p303 = pneg %p91
        $region18: #{tpu_custom_call.1} parent=11 // pred_check_branch
          %305 = sbr.rel (%p303) target = $region20
        $region19: #{tpu_custom_call.1} parent=11 // pred_region
          _
        $region20: #{tpu_custom_call.1} parent=11 // pred_fallthru
          _
        // Predicated region
        $region21: #{tpu_custom_call.1} parent=11 // pred_check
          %p306 = pneg %p112
        $region22: #{tpu_custom_call.1} parent=11 // pred_check_branch
          %308 = sbr.rel (%p306) target = $region24
        $region23: #{tpu_custom_call.1} parent=11 // pred_region
          _
        $region24: #{tpu_custom_call.1} parent=11 // pred_fallthru
          _
        // Predicated region
        $region25: #{tpu_custom_call.1} parent=11 // pred_check
          %p309 = pneg %p133
        $region26: #{tpu_custom_call.1} parent=11 // pred_check_branch
          %311 = sbr.rel (%p309) target = $region28
        $region27: #{tpu_custom_call.1} parent=11 // pred_region
          _
        $region28: #{tpu_custom_call.1} parent=11 // pred_fallthru
          _
        // Predicated region
        $region29: #{tpu_custom_call.1} parent=11 // pred_check
          %p312 = pneg %p154
        $region30: #{tpu_custom_call.1} parent=11 // pred_check_branch
          %314 = sbr.rel (%p312) target = $region32
        $region31: #{tpu_custom_call.1} parent=11 // pred_region
          _
        $region32: #{tpu_custom_call.1} parent=11 // pred_fallthru
          _
        // Predicated region
        $region33: #{tpu_custom_call.1} parent=11 // pred_check
          %p315 = pneg %p175
        $region34: #{tpu_custom_call.1} parent=11 // pred_check_branch
          %317 = sbr.rel (%p315) target = $region36
        $region35: #{tpu_custom_call.1} parent=11 // pred_region
          _
        $region36: #{tpu_custom_call.1} parent=11 // pred_fallthru
          _
        // Predicated region
        $region37: #{tpu_custom_call.1} parent=11 // pred_check
          %p318 = pneg %p196
        $region38: #{tpu_custom_call.1} parent=11 // pred_check_branch
          %320 = sbr.rel (%p318) target = $region40
        $region39: #{tpu_custom_call.1} parent=11 // pred_region
          _
        $region40: #{tpu_custom_call.1} parent=11 // pred_fallthru
          _
        // Predicated region
        $region41: #{tpu_custom_call.1} parent=11 // pred_check
          %p321 = pneg %p217
        $region42: #{tpu_custom_call.1} parent=11 // pred_check_branch
          %323 = sbr.rel (%p321) target = $region44
        $region43: #{tpu_custom_call.1} parent=11 // pred_region
          _
        $region44: #{tpu_custom_call.1} parent=11 // pred_fallthru
          _
        // Predicated region
        $region45: #{tpu_custom_call.1} parent=11 // pred_check
          %p324 = pneg %p238
        $region46: #{tpu_custom_call.1} parent=11 // pred_check_branch
          %326 = sbr.rel (%p324) target = $region48
        $region47: #{tpu_custom_call.1} parent=11 // pred_region
          _
        $region48: #{tpu_custom_call.1} parent=11 // pred_fallthru
          _
        // Predicated region
        $region49: #{tpu_custom_call.1} parent=11 // pred_check
          %p327 = pneg %p259
        $region50: #{tpu_custom_call.1} parent=11 // pred_check_branch
          %329 = sbr.rel (%p327) target = $region52
        $region51: #{tpu_custom_call.1} parent=11 // pred_region
          _
        $region52: #{tpu_custom_call.1} parent=11 // pred_fallthru
          _
      $region12: #{tpu_custom_call.1} parent=5 // pred_fallthru
        _
      %p330 = scmp.lt.s32.totalorder %s23, 2
      // Predicated region
      $region53: #{tpu_custom_call.1} parent=5 // pred_check
        %p331 = pneg %p330
      $region54: #{tpu_custom_call.1} parent=5 // pred_check_branch
        %333 = sbr.rel (%p331) target = $region56
      $region55: #{tpu_custom_call.1} parent=5 // pred_region
        // Predicated region
        $region57: #{tpu_custom_call.1} parent=55 // pred_check
          %p334 = pneg %p43
        $region58: #{tpu_custom_call.1} parent=55 // pred_check_branch
          %336 = sbr.rel (%p334) target = $region60
        $region59: #{tpu_custom_call.1} parent=55 // pred_region
          %s337 = sand.u32 %s33, 1
          %s338 = scalar_lea.sflag [#allocation4], %s337
          %s339 = sand.u32 %s33, 1
          %s340 = smul.addr %s339, 256
          %s341 = scalar_lea.vmem [#allocation3], %s340
          %343 = vsyncadd %s338, 0
          %s344 = smul.addr %s23, 32
          %s345 = smul.addr %s344, 8
          %s346 = scalar_lea.hbm %s0, %s345
          %s347 = sshll.u32 %s346, 4
          %s348 = int_to_ptr.hbm [resolvable:$true] %s347
          %s349 = sshll.u32 %s341, 4
          %s350 = int_to_ptr.vmem [resolvable:$true] %s349
          %355 = dma.hbm_to_vmem [thread:$0]  %s348, 4096, %s350, %s338, 128, 128, 8
        $region60: #{tpu_custom_call.1} parent=55 // pred_fallthru
          _
      $region56: #{tpu_custom_call.1} parent=5 // pred_fallthru
        _
      %p356 = scmp.le.s32.totalorder 1, %s23
      %p357 = scmp.lt.s32.totalorder %s23, 3
      %p358 = pnand %p356, %p357
      %p359 = pneg %p358
      // Predicated region
      $region61: #{tpu_custom_call.1} parent=5 // pred_check
        _
      $region62: #{tpu_custom_call.1} parent=5 // pred_check_branch
        %361 = sbr.rel (%p358) target = $region64
      $region63: #{tpu_custom_call.1} parent=5 // pred_region
        %s362 = ssub.s32 %s23, 1
        %s363 = sand.u32 %s36, 1
        %s364 = scalar_lea.sflag [#allocation4], %s363
        %s365 = sand.u32 %s36, 1
        %s366 = smul.addr %s365, 256
        %s367 = scalar_lea.vmem [#allocation3], %s366
        // Predicated region
        $region65: #{tpu_custom_call.1} parent=63 // pred_check
          %p368 = pneg %p49
        $region66: #{tpu_custom_call.1} parent=63 // pred_check_branch
          %370 = sbr.rel (%p368) target = $region68
        $region67: #{tpu_custom_call.1} parent=63 // pred_region
          %372 = dma.done %s364, 4096
        $region68: #{tpu_custom_call.1} parent=63 // pred_fallthru
          _
        %s373 = sand.u32 %s36, 1
        %s374 = scalar_lea.sflag [#allocation4], %s373
        %s375 = sand.u32 %s36, 1
        %s376 = smul.addr %s375, 256
        %s377 = scalar_lea.vmem [#allocation3], %s376
        %p378 = pneg %p49
        %p379 = pneg %p46
        %p380 = pneg %p70
        %p381 = pneg %p67
        %p382 = pneg %p91
        %p383 = pneg %p88
        %p384 = pneg %p112
        %p385 = pneg %p109
        %p386 = pneg %p133
        %p387 = pneg %p130
        %p388 = pneg %p154
        %p389 = pneg %p151
        %p390 = pneg %p175
        %p391 = pneg %p172
        %p392 = pneg %p196
        %p393 = pneg %p193
        %p394 = pneg %p217
        %p395 = pneg %p214
        %p396 = pneg %p238
        %p397 = pneg %p235
        %p398 = pneg %p259
        %p399 = pneg %p256
        %p400 = pneg %p285
        %p401 = pneg %p282
        %s402 = sand.u32 %s272, 1
        %s403 = scalar_lea.sflag [#allocation5], %s402
        %s404 = sand.u32 %s272, 1
        %s405 = smul.addr %s404, 256
        %s406 = scalar_lea.vmem [#allocation6], %s405
        %v408 = vld [vmem:[%s367] sm:$0xff]
        %v409 = vld [vmem:[%s367 + $0x8] sm:$0xff]
        %v410 = vld [vmem:[%s367 + $0x10] sm:$0xff]
        %v411 = vld [vmem:[%s367 + $0x18] sm:$0xff]
        %v412 = vld [vmem:[%s367 + $0x20] sm:$0xff]
        %v413 = vld [vmem:[%s367 + $0x28] sm:$0xff]
        %v414 = vld [vmem:[%s367 + $0x30] sm:$0xff]
        %v415 = vld [vmem:[%s367 + $0x38] sm:$0xff]
        %v416 = vld [vmem:[%s367 + $0x40] sm:$0xff]
        %v417 = vld [vmem:[%s367 + $0x48] sm:$0xff]
        %v418 = vld [vmem:[%s367 + $0x50] sm:$0xff]
        %v419 = vld [vmem:[%s367 + $0x58] sm:$0xff]
        %v420 = vld [vmem:[%s367 + $0x60] sm:$0xff]
        %v421 = vld [vmem:[%s367 + $0x68] sm:$0xff]
        %v422 = vld [vmem:[%s367 + $0x70] sm:$0xff]
        %v423 = vld [vmem:[%s367 + $0x78] sm:$0xff]
        %v424 = vld [vmem:[%s367 + $0x80] sm:$0xff]
        %v425 = vld [vmem:[%s367 + $0x88] sm:$0xff]
        %v426 = vld [vmem:[%s367 + $0x90] sm:$0xff]
        %v427 = vld [vmem:[%s367 + $0x98] sm:$0xff]
        %v428 = vld [vmem:[%s367 + $0xa0] sm:$0xff]
        %v429 = vld [vmem:[%s367 + $0xa8] sm:$0xff]
        %v430 = vld [vmem:[%s367 + $0xb0] sm:$0xff]
        %v431 = vld [vmem:[%s367 + $0xb8] sm:$0xff]
        %v432 = vld [vmem:[%s367 + $0xc0] sm:$0xff]
        %v433 = vld [vmem:[%s367 + $0xc8] sm:$0xff]
        %v434 = vld [vmem:[%s367 + $0xd0] sm:$0xff]
        %v435 = vld [vmem:[%s367 + $0xd8] sm:$0xff]
        %v436 = vld [vmem:[%s367 + $0xe0] sm:$0xff]
        %v437 = vld [vmem:[%s367 + $0xe8] sm:$0xff]
        %v438 = vld [vmem:[%s367 + $0xf0] sm:$0xff]
        %v439 = vld [vmem:[%s367 + $0xf8] sm:$0xff]
        %v440 = vpack.c.bf16 %v409, %v408
        %v441 = vpack.c.bf16 %v411, %v410
        %v442 = vpack.c.bf16 %v413, %v412
        %v443 = vpack.c.bf16 %v415, %v414
        %v444 = vpack.c.bf16 %v417, %v416
        %v445 = vpack.c.bf16 %v419, %v418
        %v446 = vpack.c.bf16 %v421, %v420
        %v447 = vpack.c.bf16 %v423, %v422
        %v448 = vpack.c.bf16 %v425, %v424
        %v449 = vpack.c.bf16 %v427, %v426
        %v450 = vpack.c.bf16 %v429, %v428
        %v451 = vpack.c.bf16 %v431, %v430
        %v452 = vpack.c.bf16 %v433, %v432
        %v453 = vpack.c.bf16 %v435, %v434
        %v454 = vpack.c.bf16 %v437, %v436
        %v455 = vpack.c.bf16 %v439, %v438
        %v456 = vld [vmem:[%s1] sm:$0xf]
        %v457 = vld [vmem:[%s1 + $0x4] sm:$0xf]
        %v458 = vld [vmem:[%s1 + $0x8] sm:$0xf]
        %v459 = vld [vmem:[%s1 + $0xc] sm:$0xf]
        %v460 = vld [vmem:[%s2] sm:$0x1]
        %v462 = vperm.slane %v460, 0
        %v468 = vunpack.c.l.b16 %v456
        %v469 = vunpack.c.l.b16 %v457
        %v470 = vunpack.c.l.b16 %v458
        %v471 = vunpack.c.l.b16 %v459
        %v472 = vpack.c.b16 %v469, %v468
        %v473 = vpack.c.b16 %v471, %v470
        %vm476 = vcmask 261120
        %v478 = vsel %vm476, %v440, 0
        %v481 = vsel %vm476, %v441, 0
        %v484 = vsel %vm476, %v442, 0
        %v487 = vsel %vm476, %v443, 0
        %v490 = vsel %vm476, %v444, 0
        %v493 = vsel %vm476, %v445, 0
        %v496 = vsel %vm476, %v446, 0
        %v499 = vsel %vm476, %v447, 0
        %v502 = vsel %vm476, %v448, 0
        %v505 = vsel %vm476, %v449, 0
        %v508 = vsel %vm476, %v450, 0
        %v511 = vsel %vm476, %v451, 0
        %v514 = vsel %vm476, %v452, 0
        %v517 = vsel %vm476, %v453, 0
        %v520 = vsel %vm476, %v454, 0
        %v523 = vsel %vm476, %v455, 0
        %525 = vmatpush.bf16.msra.mxu0 0
        %526 = vmatpush.bf16.msra.mxu0 0
        %527 = vmatpush.bf16.msra.mxu0 0
        %528 = vmatpush.bf16.msra.mxu0 0
        %529 = vmatpush.bf16.msra.mxu0 0
        %530 = vmatpush.bf16.msra.mxu0 0
        %531 = vmatpush.bf16.msra.mxu0 %v473
        %532 = vmatpush.bf16.msra.mxu0 %v472
        %533 = vmatmul.bf16.gmra.mxu0 %v478
        %v534 = vpop.f32.mrf.mxu0
        %v535 = vadd.f32 %v462, %v534
        %v536 = vpop.f32.mrf.mxu0
        %v537 = vadd.f32 %v462, %v536
        %538 = vmatmul.bf16.gmra.mxu0 %v481
        %v539 = vpop.f32.mrf.mxu0
        %v540 = vadd.f32 %v462, %v539
        %v541 = vpop.f32.mrf.mxu0
        %v542 = vadd.f32 %v462, %v541
        %543 = vmatmul.bf16.gmra.mxu0 %v484
        %v544 = vpop.f32.mrf.mxu0
        %v545 = vadd.f32 %v462, %v544
        %v546 = vpop.f32.mrf.mxu0
        %v547 = vadd.f32 %v462, %v546
        %548 = vmatmul.bf16.gmra.mxu0 %v487
        %v549 = vpop.f32.mrf.mxu0
        %v550 = vadd.f32 %v462, %v549
        %v551 = vpop.f32.mrf.mxu0
        %v552 = vadd.f32 %v462, %v551
        %553 = vmatmul.bf16.gmra.mxu0 %v490
        %v554 = vpop.f32.mrf.mxu0
        %v555 = vadd.f32 %v462, %v554
        %v556 = vpop.f32.mrf.mxu0
        %v557 = vadd.f32 %v462, %v556
        %558 = vmatmul.bf16.gmra.mxu0 %v493
        %v559 = vpop.f32.mrf.mxu0
        %v560 = vadd.f32 %v462, %v559
        %v561 = vpop.f32.mrf.mxu0
        %v562 = vadd.f32 %v462, %v561
        %563 = vmatmul.bf16.gmra.mxu0 %v496
        %v564 = vpop.f32.mrf.mxu0
        %v565 = vadd.f32 %v462, %v564
        %v566 = vpop.f32.mrf.mxu0
        %v567 = vadd.f32 %v462, %v566
        %568 = vmatmul.bf16.gmra.mxu0 %v499
        %v569 = vpop.f32.mrf.mxu0
        %v570 = vadd.f32 %v462, %v569
        %v571 = vpop.f32.mrf.mxu0
        %v572 = vadd.f32 %v462, %v571
        %573 = vmatmul.bf16.gmra.mxu0 %v502
        %v574 = vpop.f32.mrf.mxu0
        %v575 = vadd.f32 %v462, %v574
        %v576 = vpop.f32.mrf.mxu0
        %v577 = vadd.f32 %v462, %v576
        %578 = vmatmul.bf16.gmra.mxu0 %v505
        %v579 = vpop.f32.mrf.mxu0
        %v580 = vadd.f32 %v462, %v579
        %v581 = vpop.f32.mrf.mxu0
        %v582 = vadd.f32 %v462, %v581
        %583 = vmatmul.bf16.gmra.mxu0 %v508
        %v584 = vpop.f32.mrf.mxu0
        %v585 = vadd.f32 %v462, %v584
        %v586 = vpop.f32.mrf.mxu0
        %v587 = vadd.f32 %v462, %v586
        %588 = vmatmul.bf16.gmra.mxu0 %v511
        %v589 = vpop.f32.mrf.mxu0
        %v590 = vadd.f32 %v462, %v589
        %v591 = vpop.f32.mrf.mxu0
        %v592 = vadd.f32 %v462, %v591
        %593 = vmatmul.bf16.gmra.mxu0 %v514
        %v594 = vpop.f32.mrf.mxu0
        %v595 = vadd.f32 %v462, %v594
        %v596 = vpop.f32.mrf.mxu0
        %v597 = vadd.f32 %v462, %v596
        %598 = vmatmul.bf16.gmra.mxu0 %v517
        %v599 = vpop.f32.mrf.mxu0
        %v600 = vadd.f32 %v462, %v599
        %v601 = vpop.f32.mrf.mxu0
        %v602 = vadd.f32 %v462, %v601
        %603 = vmatmul.bf16.gmra.mxu0 %v520
        %v604 = vpop.f32.mrf.mxu0
        %v605 = vadd.f32 %v462, %v604
        %v606 = vpop.f32.mrf.mxu0
        %v607 = vadd.f32 %v462, %v606
        %608 = vmatmul.bf16.gmra.mxu0 %v523
        %v609 = vpop.f32.mrf.mxu0
        %v610 = vadd.f32 %v462, %v609
        %v611 = vpop.f32.mrf.mxu0
        %v612 = vadd.f32 %v462, %v611
        %613 = vdwg.mxu0
        %v614 = vsub.f32 0.0, %v535
        %v615 = vsub.f32 0.0, %v537
        %v616 = vsub.f32 0.0, %v540
        %v617 = vsub.f32 0.0, %v542
        %v618 = vsub.f32 0.0, %v545
        %v619 = vsub.f32 0.0, %v547
        %v620 = vsub.f32 0.0, %v550
        %v621 = vsub.f32 0.0, %v552
        %v622 = vsub.f32 0.0, %v555
        %v623 = vsub.f32 0.0, %v557
        %v624 = vsub.f32 0.0, %v560
        %v625 = vsub.f32 0.0, %v562
        %v626 = vsub.f32 0.0, %v565
        %v627 = vsub.f32 0.0, %v567
        %v628 = vsub.f32 0.0, %v570
        %v629 = vsub.f32 0.0, %v572
        %v630 = vsub.f32 0.0, %v575
        %v631 = vsub.f32 0.0, %v577
        %v632 = vsub.f32 0.0, %v580
        %v633 = vsub.f32 0.0, %v582
        %v634 = vsub.f32 0.0, %v585
        %v635 = vsub.f32 0.0, %v587
        %v636 = vsub.f32 0.0, %v590
        %v637 = vsub.f32 0.0, %v592
        %v638 = vsub.f32 0.0, %v595
        %v639 = vsub.f32 0.0, %v597
        %v640 = vsub.f32 0.0, %v600
        %v641 = vsub.f32 0.0, %v602
        %v642 = vsub.f32 0.0, %v605
        %v643 = vsub.f32 0.0, %v607
        %v644 = vsub.f32 0.0, %v610
        %v645 = vsub.f32 0.0, %v612
        %v646 = vmul.f32 %v614, 1.442695
        %v647 = vpow.pop %v646
        %v648 = vmul.f32 %v615, 1.442695
        %v649 = vpow.pop %v648
        %v650 = vmul.f32 %v616, 1.442695
        %v651 = vpow.pop %v650
        %v652 = vmul.f32 %v617, 1.442695
        %v653 = vpow.pop %v652
        %v654 = vmul.f32 %v618, 1.442695
        %v655 = vpow.pop %v654
        %v656 = vmul.f32 %v619, 1.442695
        %v657 = vpow.pop %v656
        %v658 = vmul.f32 %v620, 1.442695
        %v659 = vpow.pop %v658
        %v660 = vmul.f32 %v621, 1.442695
        %v661 = vpow.pop %v660
        %v662 = vmul.f32 %v622, 1.442695
        %v663 = vpow.pop %v662
        %v664 = vmul.f32 %v623, 1.442695
        %v665 = vpow.pop %v664
        %v666 = vmul.f32 %v624, 1.442695
        %v667 = vpow.pop %v666
        %v668 = vmul.f32 %v625, 1.442695
        %v669 = vpow.pop %v668
        %v670 = vmul.f32 %v626, 1.442695
        %v671 = vpow.pop %v670
        %v672 = vmul.f32 %v627, 1.442695
        %v673 = vpow.pop %v672
        %v674 = vmul.f32 %v628, 1.442695
        %v675 = vpow.pop %v674
        %v676 = vmul.f32 %v629, 1.442695
        %v677 = vpow.pop %v676
        %v678 = vmul.f32 %v630, 1.442695
        %v679 = vpow.pop %v678
        %v680 = vmul.f32 %v631, 1.442695
        %v681 = vpow.pop %v680
        %v682 = vmul.f32 %v632, 1.442695
        %v683 = vpow.pop %v682
        %v684 = vmul.f32 %v633, 1.442695
        %v685 = vpow.pop %v684
        %v686 = vmul.f32 %v634, 1.442695
        %v687 = vpow.pop %v686
        %v688 = vmul.f32 %v635, 1.442695
        %v689 = vpow.pop %v688
        %v690 = vmul.f32 %v636, 1.442695
        %v691 = vpow.pop %v690
        %v692 = vmul.f32 %v637, 1.442695
        %v693 = vpow.pop %v692
        %v694 = vmul.f32 %v638, 1.442695
        %v695 = vpow.pop %v694
        %v696 = vmul.f32 %v639, 1.442695
        %v697 = vpow.pop %v696
        %v698 = vmul.f32 %v640, 1.442695
        %v699 = vpow.pop %v698
        %v700 = vmul.f32 %v641, 1.442695
        %v701 = vpow.pop %v700
        %v702 = vmul.f32 %v642, 1.442695
        %v703 = vpow.pop %v702
        %v704 = vmul.f32 %v643, 1.442695
        %v705 = vpow.pop %v704
        %v706 = vmul.f32 %v644, 1.442695
        %v707 = vpow.pop %v706
        %v708 = vmul.f32 %v645, 1.442695
        %v709 = vpow.pop %v708
        %v710 = vadd.f32 %v647, 1.0
        %v711 = vadd.f32 %v649, 1.0
        %v712 = vadd.f32 %v651, 1.0
        %v713 = vadd.f32 %v653, 1.0
        %v714 = vadd.f32 %v655, 1.0
        %v715 = vadd.f32 %v657, 1.0
        %v716 = vadd.f32 %v659, 1.0
        %v717 = vadd.f32 %v661, 1.0
        %v718 = vadd.f32 %v663, 1.0
        %v719 = vadd.f32 %v665, 1.0
        %v720 = vadd.f32 %v667, 1.0
        %v721 = vadd.f32 %v669, 1.0
        %v722 = vadd.f32 %v671, 1.0
        %v723 = vadd.f32 %v673, 1.0
        %v724 = vadd.f32 %v675, 1.0
        %v725 = vadd.f32 %v677, 1.0
        %v726 = vadd.f32 %v679, 1.0
        %v727 = vadd.f32 %v681, 1.0
        %v728 = vadd.f32 %v683, 1.0
        %v729 = vadd.f32 %v685, 1.0
        %v730 = vadd.f32 %v687, 1.0
        %v731 = vadd.f32 %v689, 1.0
        %v732 = vadd.f32 %v691, 1.0
        %v733 = vadd.f32 %v693, 1.0
        %v734 = vadd.f32 %v695, 1.0
        %v735 = vadd.f32 %v697, 1.0
        %v736 = vadd.f32 %v699, 1.0
        %v737 = vadd.f32 %v701, 1.0
        %v738 = vadd.f32 %v703, 1.0
        %v739 = vadd.f32 %v705, 1.0
        %v740 = vadd.f32 %v707, 1.0
        %v741 = vadd.f32 %v709, 1.0
        %v742 = vrcp.pop %v710
        %v743 = vrcp.pop %v711
        %v744 = vrcp.pop %v712
        %v745 = vrcp.pop %v713
        %v746 = vrcp.pop %v714
        %v747 = vrcp.pop %v715
        %v748 = vrcp.pop %v716
        %v749 = vrcp.pop %v717
        %v750 = vrcp.pop %v718
        %v751 = vrcp.pop %v719
        %v752 = vrcp.pop %v720
        %v753 = vrcp.pop %v721
        %v754 = vrcp.pop %v722
        %v755 = vrcp.pop %v723
        %v756 = vrcp.pop %v724
        %v757 = vrcp.pop %v725
        %v758 = vrcp.pop %v726
        %v759 = vrcp.pop %v727
        %v760 = vrcp.pop %v728
        %v761 = vrcp.pop %v729
        %v762 = vrcp.pop %v730
        %v763 = vrcp.pop %v731
        %v764 = vrcp.pop %v732
        %v765 = vrcp.pop %v733
        %v766 = vrcp.pop %v734
        %v767 = vrcp.pop %v735
        %v768 = vrcp.pop %v736
        %v769 = vrcp.pop %v737
        %v770 = vrcp.pop %v738
        %v771 = vrcp.pop %v739
        %v772 = vrcp.pop %v740
        %v773 = vrcp.pop %v741
        %v774 = vmul.f32 %v535, %v742
        %v775 = vmul.f32 %v537, %v743
        %v776 = vmul.f32 %v540, %v744
        %v777 = vmul.f32 %v542, %v745
        %v778 = vmul.f32 %v545, %v746
        %v779 = vmul.f32 %v547, %v747
        %v780 = vmul.f32 %v550, %v748
        %v781 = vmul.f32 %v552, %v749
        %v782 = vmul.f32 %v555, %v750
        %v783 = vmul.f32 %v557, %v751
        %v784 = vmul.f32 %v560, %v752
        %v785 = vmul.f32 %v562, %v753
        %v786 = vmul.f32 %v565, %v754
        %v787 = vmul.f32 %v567, %v755
        %v788 = vmul.f32 %v570, %v756
        %v789 = vmul.f32 %v572, %v757
        %v790 = vmul.f32 %v575, %v758
        %v791 = vmul.f32 %v577, %v759
        %v792 = vmul.f32 %v580, %v760
        %v793 = vmul.f32 %v582, %v761
        %v794 = vmul.f32 %v585, %v762
        %v795 = vmul.f32 %v587, %v763
        %v796 = vmul.f32 %v590, %v764
        %v797 = vmul.f32 %v592, %v765
        %v798 = vmul.f32 %v595, %v766
        %v799 = vmul.f32 %v597, %v767
        %v800 = vmul.f32 %v600, %v768
        %v801 = vmul.f32 %v602, %v769
        %v802 = vmul.f32 %v605, %v770
        %v803 = vmul.f32 %v607, %v771
        %v804 = vmul.f32 %v610, %v772
        %v805 = vmul.f32 %v612, %v773
        %806 = vst [vmem:[#allocation2] sm:$0xff] 0.0
        %807 = vst [vmem:[#allocation2 + $0x8] sm:$0xff] 0.0
        %808 = vst [vmem:[#allocation2 + $0x10] sm:$0x3] 0.0
        %809 = vst [vmem:[#allocation2 + $0x18] sm:$0xff] 0.0
        %810 = vst [vmem:[#allocation2 + $0x20] sm:$0xff] 0.0
        %811 = vst [vmem:[#allocation2 + $0x28] sm:$0x3] 0.0
        %812 = vst [vmem:[#allocation2 + $0x30] sm:$0xff] 0.0
        %813 = vst [vmem:[#allocation2 + $0x38] sm:$0xff] 0.0
        %814 = vst [vmem:[#allocation2 + $0x40] sm:$0x3] 0.0
        %815 = vst [vmem:[#allocation2 + $0x48] sm:$0xff] 0.0
        %816 = vst [vmem:[#allocation2 + $0x50] sm:$0xff] 0.0
        %817 = vst [vmem:[#allocation2 + $0x58] sm:$0x3] 0.0
        %818 = vst [vmem:[#allocation2 + $0x60] sm:$0xff] 0.0
        %819 = vst [vmem:[#allocation2 + $0x68] sm:$0xff] 0.0
        %820 = vst [vmem:[#allocation2 + $0x70] sm:$0x3] 0.0
        %821 = vst [vmem:[#allocation2 + $0x78] sm:$0xff] 0.0
        %822 = vst [vmem:[#allocation2 + $0x80] sm:$0xff] 0.0
        %823 = vst [vmem:[#allocation2 + $0x88] sm:$0x3] 0.0
        %824 = vst [vmem:[#allocation2 + $0x90] sm:$0xff] 0.0
        %825 = vst [vmem:[#allocation2 + $0x98] sm:$0xff] 0.0
        %826 = vst [vmem:[#allocation2 + $0xa0] sm:$0x3] 0.0
        %827 = vst [vmem:[#allocation2 + $0xa8] sm:$0xff] 0.0
        %828 = vst [vmem:[#allocation2 + $0xb0] sm:$0xff] 0.0
        %829 = vst [vmem:[#allocation2 + $0xb8] sm:$0x3] 0.0
        %830 = vst [vmem:[#allocation2 + $0xc0] sm:$0xff] 0.0
        %831 = vst [vmem:[#allocation2 + $0xc8] sm:$0xff] 0.0
        %832 = vst [vmem:[#allocation2 + $0xd0] sm:$0x3] 0.0
        %833 = vst [vmem:[#allocation2 + $0xd8] sm:$0xff] 0.0
        %834 = vst [vmem:[#allocation2 + $0xe0] sm:$0xff] 0.0
        %835 = vst [vmem:[#allocation2 + $0xe8] sm:$0x3] 0.0
        %836 = vst [vmem:[#allocation2 + $0xf0] sm:$0xff] 0.0
        %837 = vst [vmem:[#allocation2 + $0xf8] sm:$0xff] 0.0
        %838 = vst [vmem:[#allocation2 + $0x100] sm:$0x3] 0.0
        %839 = vst [vmem:[#allocation2 + $0x108] sm:$0xff] 0.0
        %840 = vst [vmem:[#allocation2 + $0x110] sm:$0xff] 0.0
        %841 = vst [vmem:[#allocation2 + $0x118] sm:$0x3] 0.0
        %842 = vst [vmem:[#allocation2 + $0x120] sm:$0xff] 0.0
        %843 = vst [vmem:[#allocation2 + $0x128] sm:$0xff] 0.0
        %844 = vst [vmem:[#allocation2 + $0x130] sm:$0x3] 0.0
        %845 = vst [vmem:[#allocation2 + $0x138] sm:$0xff] 0.0
        %846 = vst [vmem:[#allocation2 + $0x140] sm:$0xff] 0.0
        %847 = vst [vmem:[#allocation2 + $0x148] sm:$0x3] 0.0
        %848 = vst [vmem:[#allocation2 + $0x150] sm:$0xff] 0.0
        %849 = vst [vmem:[#allocation2 + $0x158] sm:$0xff] 0.0
        %850 = vst [vmem:[#allocation2 + $0x160] sm:$0x3] 0.0
        %851 = vst [vmem:[#allocation2 + $0x168] sm:$0xff] 0.0
        %852 = vst [vmem:[#allocation2 + $0x170] sm:$0xff] 0.0
        %853 = vst [vmem:[#allocation2 + $0x178] sm:$0x3] 0.0
        %854 = vst [vmem:[#allocation2 + $0x180] sm:$0xff] 0.0
        %855 = vst [vmem:[#allocation2 + $0x188] sm:$0xff] 0.0
        %856 = vst [vmem:[#allocation2 + $0x190] sm:$0x3] 0.0
        %857 = vst [vmem:[#allocation2 + $0x198] sm:$0xff] 0.0
        %858 = vst [vmem:[#allocation2 + $0x1a0] sm:$0xff] 0.0
        %859 = vst [vmem:[#allocation2 + $0x1a8] sm:$0x3] 0.0
        %s860 = scalar_lea.vmem [#allocation2], 24
        %861 = vst [vmem:[%s860 + $0x1] sm:$0xff] %v774
        %862 = vst [vmem:[%s860 + $0x9] sm:$0xff] %v775
        %863 = vst [vmem:[%s860 + $0x19] sm:$0xff] %v776
        %864 = vst [vmem:[%s860 + $0x21] sm:$0xff] %v777
        %865 = vst [vmem:[%s860 + $0x31] sm:$0xff] %v778
        %866 = vst [vmem:[%s860 + $0x39] sm:$0xff] %v779
        %867 = vst [vmem:[%s860 + $0x49] sm:$0xff] %v780
        %868 = vst [vmem:[%s860 + $0x51] sm:$0xff] %v781
        %869 = vst [vmem:[%s860 + $0x61] sm:$0xff] %v782
        %870 = vst [vmem:[%s860 + $0x69] sm:$0xff] %v783
        %871 = vst [vmem:[%s860 + $0x79] sm:$0xff] %v784
        %872 = vst [vmem:[%s860 + $0x81] sm:$0xff] %v785
        %873 = vst [vmem:[%s860 + $0x91] sm:$0xff] %v786
        %874 = vst [vmem:[%s860 + $0x99] sm:$0xff] %v787
        %875 = vst [vmem:[%s860 + $0xa9] sm:$0xff] %v788
        %876 = vst [vmem:[%s860 + $0xb1] sm:$0xff] %v789
        %877 = vst [vmem:[%s860 + $0xc1] sm:$0xff] %v790
        %878 = vst [vmem:[%s860 + $0xc9] sm:$0xff] %v791
        %879 = vst [vmem:[%s860 + $0xd9] sm:$0xff] %v792
        %880 = vst [vmem:[%s860 + $0xe1] sm:$0xff] %v793
        %881 = vst [vmem:[%s860 + $0xf1] sm:$0xff] %v794
        %882 = vst [vmem:[%s860 + $0xf9] sm:$0xff] %v795
        %883 = vst [vmem:[%s860 + $0x109] sm:$0xff] %v796
        %884 = vst [vmem:[%s860 + $0x111] sm:$0xff] %v797
        %885 = vst [vmem:[%s860 + $0x121] sm:$0xff] %v798
        %886 = vst [vmem:[%s860 + $0x129] sm:$0xff] %v799
        %887 = vst [vmem:[%s860 + $0x139] sm:$0xff] %v800
        %888 = vst [vmem:[%s860 + $0x141] sm:$0xff] %v801
        %889 = vst [vmem:[%s860 + $0x151] sm:$0xff] %v802
        %890 = vst [vmem:[%s860 + $0x159] sm:$0xff] %v803
        %891 = vst [vmem:[%s860 + $0x169] sm:$0xff] %v804
        %892 = vst [vmem:[%s860 + $0x171] sm:$0xff] %v805
        %v893 = vld [vmem:[%s3] sm:$0x7]
        %v894 = vld [vmem:[%s3 + $0x4] sm:$0x7]
        %v895 = vld [vmem:[%s3 + $0x8] sm:$0x7]
        %v896 = vld [vmem:[#allocation2] sm:$0xff]
        %v897 = vld [vmem:[#allocation2 + $0x8] sm:$0xff]
        %v898 = vld [vmem:[#allocation2 + $0x18] sm:$0xff]
        %v899 = vld [vmem:[#allocation2 + $0x20] sm:$0xff]
        %v900 = vld [vmem:[#allocation2 + $0x30] sm:$0xff]
        %v901 = vld [vmem:[#allocation2 + $0x38] sm:$0xff]
        %v902 = vld [vmem:[#allocation2 + $0x48] sm:$0xff]
        %v903 = vld [vmem:[#allocation2 + $0x50] sm:$0xff]
        %v904 = vld [vmem:[#allocation2 + $0x60] sm:$0xff]
        %v905 = vld [vmem:[#allocation2 + $0x68] sm:$0xff]
        %v906 = vld [vmem:[#allocation2 + $0x78] sm:$0xff]
        %v907 = vld [vmem:[#allocation2 + $0x80] sm:$0xff]
        %v908 = vld [vmem:[#allocation2 + $0x90] sm:$0xff]
        %v909 = vld [vmem:[#allocation2 + $0x98] sm:$0xff]
        %v910 = vld [vmem:[#allocation2 + $0xa8] sm:$0xff]
        %v911 = vld [vmem:[#allocation2 + $0xb0] sm:$0xff]
        %v912 = vld [vmem:[#allocation2 + $0xc0] sm:$0xff]
        %v913 = vld [vmem:[#allocation2 + $0xc8] sm:$0xff]
        %v914 = vld [vmem:[#allocation2 + $0xd8] sm:$0xff]
        %v915 = vld [vmem:[#allocation2 + $0xe0] sm:$0xff]
        %v916 = vld [vmem:[#allocation2 + $0xf0] sm:$0xff]
        %v917 = vld [vmem:[#allocation2 + $0xf8] sm:$0xff]
        %v918 = vld [vmem:[#allocation2 + $0x108] sm:$0xff]
        %v919 = vld [vmem:[#allocation2 + $0x110] sm:$0xff]
        %v920 = vld [vmem:[#allocation2 + $0x120] sm:$0xff]
        %v921 = vld [vmem:[#allocation2 + $0x128] sm:$0xff]
        %v922 = vld [vmem:[#allocation2 + $0x138] sm:$0xff]
        %v923 = vld [vmem:[#allocation2 + $0x140] sm:$0xff]
        %v924 = vld [vmem:[#allocation2 + $0x150] sm:$0xff]
        %v925 = vld [vmem:[#allocation2 + $0x158] sm:$0xff]
        %v926 = vld [vmem:[#allocation2 + $0x168] sm:$0xff]
        %v927 = vld [vmem:[#allocation2 + $0x170] sm:$0xff]
        %v928 = vperm.slane %v893, 0
        %v929 = vmul.f32 %v896, %v928
        %v930 = vmul.f32 %v897, %v928
        %v931 = vmul.f32 %v898, %v928
        %v932 = vmul.f32 %v899, %v928
        %v933 = vmul.f32 %v900, %v928
        %v934 = vmul.f32 %v901, %v928
        %v935 = vmul.f32 %v902, %v928
        %v936 = vmul.f32 %v903, %v928
        %v937 = vmul.f32 %v904, %v928
        %v938 = vmul.f32 %v905, %v928
        %v939 = vmul.f32 %v906, %v928
        %v940 = vmul.f32 %v907, %v928
        %v941 = vmul.f32 %v908, %v928
        %v942 = vmul.f32 %v909, %v928
        %v943 = vmul.f32 %v910, %v928
        %v944 = vmul.f32 %v911, %v928
        %v945 = vmul.f32 %v912, %v928
        %v946 = vmul.f32 %v913, %v928
        %v947 = vmul.f32 %v914, %v928
        %v948 = vmul.f32 %v915, %v928
        %v949 = vmul.f32 %v916, %v928
        %v950 = vmul.f32 %v917, %v928
        %v951 = vmul.f32 %v918, %v928
        %v952 = vmul.f32 %v919, %v928
        %v953 = vmul.f32 %v920, %v928
        %v954 = vmul.f32 %v921, %v928
        %v955 = vmul.f32 %v922, %v928
        %v956 = vmul.f32 %v923, %v928
        %v957 = vmul.f32 %v924, %v928
        %v958 = vmul.f32 %v925, %v928
        %v959 = vmul.f32 %v926, %v928
        %v960 = vmul.f32 %v927, %v928
        %v961 = vadd.f32 %v929, 0.0
        %v962 = vadd.f32 %v930, 0.0
        %v963 = vadd.f32 %v931, 0.0
        %v964 = vadd.f32 %v932, 0.0
        %v965 = vadd.f32 %v933, 0.0
        %v966 = vadd.f32 %v934, 0.0
        %v967 = vadd.f32 %v935, 0.0
        %v968 = vadd.f32 %v936, 0.0
        %v969 = vadd.f32 %v937, 0.0
        %v970 = vadd.f32 %v938, 0.0
        %v971 = vadd.f32 %v939, 0.0
        %v972 = vadd.f32 %v940, 0.0
        %v973 = vadd.f32 %v941, 0.0
        %v974 = vadd.f32 %v942, 0.0
        %v975 = vadd.f32 %v943, 0.0
        %v976 = vadd.f32 %v944, 0.0
        %v977 = vadd.f32 %v945, 0.0
        %v978 = vadd.f32 %v946, 0.0
        %v979 = vadd.f32 %v947, 0.0
        %v980 = vadd.f32 %v948, 0.0
        %v981 = vadd.f32 %v949, 0.0
        %v982 = vadd.f32 %v950, 0.0
        %v983 = vadd.f32 %v951, 0.0
        %v984 = vadd.f32 %v952, 0.0
        %v985 = vadd.f32 %v953, 0.0
        %v986 = vadd.f32 %v954, 0.0
        %v987 = vadd.f32 %v955, 0.0
        %v988 = vadd.f32 %v956, 0.0
        %v989 = vadd.f32 %v957, 0.0
        %v990 = vadd.f32 %v958, 0.0
        %v991 = vadd.f32 %v959, 0.0
        %v992 = vadd.f32 %v960, 0.0
        %v993 = vld [vmem:[#allocation2 + $0x1] sm:$0xff]
        %v994 = vld [vmem:[#allocation2 + $0x9] sm:$0xff]
        %v995 = vld [vmem:[#allocation2 + $0x19] sm:$0xff]
        %v996 = vld [vmem:[#allocation2 + $0x21] sm:$0xff]
        %v997 = vld [vmem:[#allocation2 + $0x31] sm:$0xff]
        %v998 = vld [vmem:[#allocation2 + $0x39] sm:$0xff]
        %v999 = vld [vmem:[#allocation2 + $0x49] sm:$0xff]
        %v1000 = vld [vmem:[#allocation2 + $0x51] sm:$0xff]
        %v1001 = vld [vmem:[#allocation2 + $0x61] sm:$0xff]
        %v1002 = vld [vmem:[#allocation2 + $0x69] sm:$0xff]
        %v1003 = vld [vmem:[#allocation2 + $0x79] sm:$0xff]
        %v1004 = vld [vmem:[#allocation2 + $0x81] sm:$0xff]
        %v1005 = vld [vmem:[#allocation2 + $0x91] sm:$0xff]
        %v1006 = vld [vmem:[#allocation2 + $0x99] sm:$0xff]
        %v1007 = vld [vmem:[#allocation2 + $0xa9] sm:$0xff]
        %v1008 = vld [vmem:[#allocation2 + $0xb1] sm:$0xff]
        %v1009 = vld [vmem:[#allocation2 + $0xc1] sm:$0xff]
        %v1010 = vld [vmem:[#allocation2 + $0xc9] sm:$0xff]
        %v1011 = vld [vmem:[#allocation2 + $0xd9] sm:$0xff]
        %v1012 = vld [vmem:[#allocation2 + $0xe1] sm:$0xff]
        %v1013 = vld [vmem:[#allocation2 + $0xf1] sm:$0xff]
        %v1014 = vld [vmem:[#allocation2 + $0xf9] sm:$0xff]
        %v1015 = vld [vmem:[#allocation2 + $0x109] sm:$0xff]
        %v1016 = vld [vmem:[#allocation2 + $0x111] sm:$0xff]
        %v1017 = vld [vmem:[#allocation2 + $0x121] sm:$0xff]
        %v1018 = vld [vmem:[#allocation2 + $0x129] sm:$0xff]
        %v1019 = vld [vmem:[#allocation2 + $0x139] sm:$0xff]
        %v1020 = vld [vmem:[#allocation2 + $0x141] sm:$0xff]
        %v1021 = vld [vmem:[#allocation2 + $0x151] sm:$0xff]
        %v1022 = vld [vmem:[#allocation2 + $0x159] sm:$0xff]
        %v1023 = vld [vmem:[#allocation2 + $0x169] sm:$0xff]
        %v1024 = vld [vmem:[#allocation2 + $0x171] sm:$0xff]
        %v1025 = vperm.slane %v893, 1
        %v1026 = vmul.f32 %v993, %v1025
        %v1027 = vmul.f32 %v994, %v1025
        %v1028 = vmul.f32 %v995, %v1025
        %v1029 = vmul.f32 %v996, %v1025
        %v1030 = vmul.f32 %v997, %v1025
        %v1031 = vmul.f32 %v998, %v1025
        %v1032 = vmul.f32 %v999, %v1025
        %v1033 = vmul.f32 %v1000, %v1025
        %v1034 = vmul.f32 %v1001, %v1025
        %v1035 = vmul.f32 %v1002, %v1025
        %v1036 = vmul.f32 %v1003, %v1025
        %v1037 = vmul.f32 %v1004, %v1025
        %v1038 = vmul.f32 %v1005, %v1025
        %v1039 = vmul.f32 %v1006, %v1025
        %v1040 = vmul.f32 %v1007, %v1025
        %v1041 = vmul.f32 %v1008, %v1025
        %v1042 = vmul.f32 %v1009, %v1025
        %v1043 = vmul.f32 %v1010, %v1025
        %v1044 = vmul.f32 %v1011, %v1025
        %v1045 = vmul.f32 %v1012, %v1025
        %v1046 = vmul.f32 %v1013, %v1025
        %v1047 = vmul.f32 %v1014, %v1025
        %v1048 = vmul.f32 %v1015, %v1025
        %v1049 = vmul.f32 %v1016, %v1025
        %v1050 = vmul.f32 %v1017, %v1025
        %v1051 = vmul.f32 %v1018, %v1025
        %v1052 = vmul.f32 %v1019, %v1025
        %v1053 = vmul.f32 %v1020, %v1025
        %v1054 = vmul.f32 %v1021, %v1025
        %v1055 = vmul.f32 %v1022, %v1025
        %v1056 = vmul.f32 %v1023, %v1025
        %v1057 = vmul.f32 %v1024, %v1025
        %v1058 = vadd.f32 %v961, %v1026
        %v1059 = vadd.f32 %v962, %v1027
        %v1060 = vadd.f32 %v963, %v1028
        %v1061 = vadd.f32 %v964, %v1029
        %v1062 = vadd.f32 %v965, %v1030
        %v1063 = vadd.f32 %v966, %v1031
        %v1064 = vadd.f32 %v967, %v1032
        %v1065 = vadd.f32 %v968, %v1033
        %v1066 = vadd.f32 %v969, %v1034
        %v1067 = vadd.f32 %v970, %v1035
        %v1068 = vadd.f32 %v971, %v1036
        %v1069 = vadd.f32 %v972, %v1037
        %v1070 = vadd.f32 %v973, %v1038
        %v1071 = vadd.f32 %v974, %v1039
        %v1072 = vadd.f32 %v975, %v1040
        %v1073 = vadd.f32 %v976, %v1041
        %v1074 = vadd.f32 %v977, %v1042
        %v1075 = vadd.f32 %v978, %v1043
        %v1076 = vadd.f32 %v979, %v1044
        %v1077 = vadd.f32 %v980, %v1045
        %v1078 = vadd.f32 %v981, %v1046
        %v1079 = vadd.f32 %v982, %v1047
        %v1080 = vadd.f32 %v983, %v1048
        %v1081 = vadd.f32 %v984, %v1049
        %v1082 = vadd.f32 %v985, %v1050
        %v1083 = vadd.f32 %v986, %v1051
        %v1084 = vadd.f32 %v987, %v1052
        %v1085 = vadd.f32 %v988, %v1053
        %v1086 = vadd.f32 %v989, %v1054
        %v1087 = vadd.f32 %v990, %v1055
        %v1088 = vadd.f32 %v991, %v1056
        %v1089 = vadd.f32 %v992, %v1057
        %v1090 = vld [vmem:[#allocation2 + $0x2] sm:$0xff]
        %v1091 = vld [vmem:[#allocation2 + $0xa] sm:$0xff]
        %v1092 = vld [vmem:[#allocation2 + $0x1a] sm:$0xff]
        %v1093 = vld [vmem:[#allocation2 + $0x22] sm:$0xff]
        %v1094 = vld [vmem:[#allocation2 + $0x32] sm:$0xff]
        %v1095 = vld [vmem:[#allocation2 + $0x3a] sm:$0xff]
        %v1096 = vld [vmem:[#allocation2 + $0x4a] sm:$0xff]
        %v1097 = vld [vmem:[#allocation2 + $0x52] sm:$0xff]
        %v1098 = vld [vmem:[#allocation2 + $0x62] sm:$0xff]
        %v1099 = vld [vmem:[#allocation2 + $0x6a] sm:$0xff]
        %v1100 = vld [vmem:[#allocation2 + $0x7a] sm:$0xff]
        %v1101 = vld [vmem:[#allocation2 + $0x82] sm:$0xff]
        %v1102 = vld [vmem:[#allocation2 + $0x92] sm:$0xff]
        %v1103 = vld [vmem:[#allocation2 + $0x9a] sm:$0xff]
        %v1104 = vld [vmem:[#allocation2 + $0xaa] sm:$0xff]
        %v1105 = vld [vmem:[#allocation2 + $0xb2] sm:$0xff]
        %v1106 = vld [vmem:[#allocation2 + $0xc2] sm:$0xff]
        %v1107 = vld [vmem:[#allocation2 + $0xca] sm:$0xff]
        %v1108 = vld [vmem:[#allocation2 + $0xda] sm:$0xff]
        %v1109 = vld [vmem:[#allocation2 + $0xe2] sm:$0xff]
        %v1110 = vld [vmem:[#allocation2 + $0xf2] sm:$0xff]
        %v1111 = vld [vmem:[#allocation2 + $0xfa] sm:$0xff]
        %v1112 = vld [vmem:[#allocation2 + $0x10a] sm:$0xff]
        %v1113 = vld [vmem:[#allocation2 + $0x112] sm:$0xff]
        %v1114 = vld [vmem:[#allocation2 + $0x122] sm:$0xff]
        %v1115 = vld [vmem:[#allocation2 + $0x12a] sm:$0xff]
        %v1116 = vld [vmem:[#allocation2 + $0x13a] sm:$0xff]
        %v1117 = vld [vmem:[#allocation2 + $0x142] sm:$0xff]
        %v1118 = vld [vmem:[#allocation2 + $0x152] sm:$0xff]
        %v1119 = vld [vmem:[#allocation2 + $0x15a] sm:$0xff]
        %v1120 = vld [vmem:[#allocation2 + $0x16a] sm:$0xff]
        %v1121 = vld [vmem:[#allocation2 + $0x172] sm:$0xff]
        %v1122 = vperm.slane %v893, 2
        %v1123 = vmul.f32 %v1090, %v1122
        %v1124 = vmul.f32 %v1091, %v1122
        %v1125 = vmul.f32 %v1092, %v1122
        %v1126 = vmul.f32 %v1093, %v1122
        %v1127 = vmul.f32 %v1094, %v1122
        %v1128 = vmul.f32 %v1095, %v1122
        %v1129 = vmul.f32 %v1096, %v1122
        %v1130 = vmul.f32 %v1097, %v1122
        %v1131 = vmul.f32 %v1098, %v1122
        %v1132 = vmul.f32 %v1099, %v1122
        %v1133 = vmul.f32 %v1100, %v1122
        %v1134 = vmul.f32 %v1101, %v1122
        %v1135 = vmul.f32 %v1102, %v1122
        %v1136 = vmul.f32 %v1103, %v1122
        %v1137 = vmul.f32 %v1104, %v1122
        %v1138 = vmul.f32 %v1105, %v1122
        %v1139 = vmul.f32 %v1106, %v1122
        %v1140 = vmul.f32 %v1107, %v1122
        %v1141 = vmul.f32 %v1108, %v1122
        %v1142 = vmul.f32 %v1109, %v1122
        %v1143 = vmul.f32 %v1110, %v1122
        %v1144 = vmul.f32 %v1111, %v1122
        %v1145 = vmul.f32 %v1112, %v1122
        %v1146 = vmul.f32 %v1113, %v1122
        %v1147 = vmul.f32 %v1114, %v1122
        %v1148 = vmul.f32 %v1115, %v1122
        %v1149 = vmul.f32 %v1116, %v1122
        %v1150 = vmul.f32 %v1117, %v1122
        %v1151 = vmul.f32 %v1118, %v1122
        %v1152 = vmul.f32 %v1119, %v1122
        %v1153 = vmul.f32 %v1120, %v1122
        %v1154 = vmul.f32 %v1121, %v1122
        %v1155 = vadd.f32 %v1058, %v1123
        %v1156 = vadd.f32 %v1059, %v1124
        %v1157 = vadd.f32 %v1060, %v1125
        %v1158 = vadd.f32 %v1061, %v1126
        %v1159 = vadd.f32 %v1062, %v1127
        %v1160 = vadd.f32 %v1063, %v1128
        %v1161 = vadd.f32 %v1064, %v1129
        %v1162 = vadd.f32 %v1065, %v1130
        %v1163 = vadd.f32 %v1066, %v1131
        %v1164 = vadd.f32 %v1067, %v1132
        %v1165 = vadd.f32 %v1068, %v1133
        %v1166 = vadd.f32 %v1069, %v1134
        %v1167 = vadd.f32 %v1070, %v1135
        %v1168 = vadd.f32 %v1071, %v1136
        %v1169 = vadd.f32 %v1072, %v1137
        %v1170 = vadd.f32 %v1073, %v1138
        %v1171 = vadd.f32 %v1074, %v1139
        %v1172 = vadd.f32 %v1075, %v1140
        %v1173 = vadd.f32 %v1076, %v1141
        %v1174 = vadd.f32 %v1077, %v1142
        %v1175 = vadd.f32 %v1078, %v1143
        %v1176 = vadd.f32 %v1079, %v1144
        %v1177 = vadd.f32 %v1080, %v1145
        %v1178 = vadd.f32 %v1081, %v1146
        %v1179 = vadd.f32 %v1082, %v1147
        %v1180 = vadd.f32 %v1083, %v1148
        %v1181 = vadd.f32 %v1084, %v1149
        %v1182 = vadd.f32 %v1085, %v1150
        %v1183 = vadd.f32 %v1086, %v1151
        %v1184 = vadd.f32 %v1087, %v1152
        %v1185 = vadd.f32 %v1088, %v1153
        %v1186 = vadd.f32 %v1089, %v1154
        %v1187 = vld [vmem:[%s860] sm:$0xff]
        %v1188 = vld [vmem:[%s860 + $0x8] sm:$0xff]
        %v1189 = vld [vmem:[%s860 + $0x18] sm:$0xff]
        %v1190 = vld [vmem:[%s860 + $0x20] sm:$0xff]
        %v1191 = vld [vmem:[%s860 + $0x30] sm:$0xff]
        %v1192 = vld [vmem:[%s860 + $0x38] sm:$0xff]
        %v1193 = vld [vmem:[%s860 + $0x48] sm:$0xff]
        %v1194 = vld [vmem:[%s860 + $0x50] sm:$0xff]
        %v1195 = vld [vmem:[%s860 + $0x60] sm:$0xff]
        %v1196 = vld [vmem:[%s860 + $0x68] sm:$0xff]
        %v1197 = vld [vmem:[%s860 + $0x78] sm:$0xff]
        %v1198 = vld [vmem:[%s860 + $0x80] sm:$0xff]
        %v1199 = vld [vmem:[%s860 + $0x90] sm:$0xff]
        %v1200 = vld [vmem:[%s860 + $0x98] sm:$0xff]
        %v1201 = vld [vmem:[%s860 + $0xa8] sm:$0xff]
        %v1202 = vld [vmem:[%s860 + $0xb0] sm:$0xff]
        %v1203 = vld [vmem:[%s860 + $0xc0] sm:$0xff]
        %v1204 = vld [vmem:[%s860 + $0xc8] sm:$0xff]
        %v1205 = vld [vmem:[%s860 + $0xd8] sm:$0xff]
        %v1206 = vld [vmem:[%s860 + $0xe0] sm:$0xff]
        %v1207 = vld [vmem:[%s860 + $0xf0] sm:$0xff]
        %v1208 = vld [vmem:[%s860 + $0xf8] sm:$0xff]
        %v1209 = vld [vmem:[%s860 + $0x108] sm:$0xff]
        %v1210 = vld [vmem:[%s860 + $0x110] sm:$0xff]
        %v1211 = vld [vmem:[%s860 + $0x120] sm:$0xff]
        %v1212 = vld [vmem:[%s860 + $0x128] sm:$0xff]
        %v1213 = vld [vmem:[%s860 + $0x138] sm:$0xff]
        %v1214 = vld [vmem:[%s860 + $0x140] sm:$0xff]
        %v1215 = vld [vmem:[%s860 + $0x150] sm:$0xff]
        %v1216 = vld [vmem:[%s860 + $0x158] sm:$0xff]
        %v1217 = vld [vmem:[%s860 + $0x168] sm:$0xff]
        %v1218 = vld [vmem:[%s860 + $0x170] sm:$0xff]
        %v1219 = vperm.slane %v894, 0
        %v1220 = vmul.f32 %v1187, %v1219
        %v1221 = vmul.f32 %v1188, %v1219
        %v1222 = vmul.f32 %v1189, %v1219
        %v1223 = vmul.f32 %v1190, %v1219
        %v1224 = vmul.f32 %v1191, %v1219
        %v1225 = vmul.f32 %v1192, %v1219
        %v1226 = vmul.f32 %v1193, %v1219
        %v1227 = vmul.f32 %v1194, %v1219
        %v1228 = vmul.f32 %v1195, %v1219
        %v1229 = vmul.f32 %v1196, %v1219
        %v1230 = vmul.f32 %v1197, %v1219
        %v1231 = vmul.f32 %v1198, %v1219
        %v1232 = vmul.f32 %v1199, %v1219
        %v1233 = vmul.f32 %v1200, %v1219
        %v1234 = vmul.f32 %v1201, %v1219
        %v1235 = vmul.f32 %v1202, %v1219
        %v1236 = vmul.f32 %v1203, %v1219
        %v1237 = vmul.f32 %v1204, %v1219
        %v1238 = vmul.f32 %v1205, %v1219
        %v1239 = vmul.f32 %v1206, %v1219
        %v1240 = vmul.f32 %v1207, %v1219
        %v1241 = vmul.f32 %v1208, %v1219
        %v1242 = vmul.f32 %v1209, %v1219
        %v1243 = vmul.f32 %v1210, %v1219
        %v1244 = vmul.f32 %v1211, %v1219
        %v1245 = vmul.f32 %v1212, %v1219
        %v1246 = vmul.f32 %v1213, %v1219
        %v1247 = vmul.f32 %v1214, %v1219
        %v1248 = vmul.f32 %v1215, %v1219
        %v1249 = vmul.f32 %v1216, %v1219
        %v1250 = vmul.f32 %v1217, %v1219
        %v1251 = vmul.f32 %v1218, %v1219
        %v1252 = vadd.f32 %v1155, %v1220
        %v1253 = vadd.f32 %v1156, %v1221
        %v1254 = vadd.f32 %v1157, %v1222
        %v1255 = vadd.f32 %v1158, %v1223
        %v1256 = vadd.f32 %v1159, %v1224
        %v1257 = vadd.f32 %v1160, %v1225
        %v1258 = vadd.f32 %v1161, %v1226
        %v1259 = vadd.f32 %v1162, %v1227
        %v1260 = vadd.f32 %v1163, %v1228
        %v1261 = vadd.f32 %v1164, %v1229
        %v1262 = vadd.f32 %v1165, %v1230
        %v1263 = vadd.f32 %v1166, %v1231
        %v1264 = vadd.f32 %v1167, %v1232
        %v1265 = vadd.f32 %v1168, %v1233
        %v1266 = vadd.f32 %v1169, %v1234
        %v1267 = vadd.f32 %v1170, %v1235
        %v1268 = vadd.f32 %v1171, %v1236
        %v1269 = vadd.f32 %v1172, %v1237
        %v1270 = vadd.f32 %v1173, %v1238
        %v1271 = vadd.f32 %v1174, %v1239
        %v1272 = vadd.f32 %v1175, %v1240
        %v1273 = vadd.f32 %v1176, %v1241
        %v1274 = vadd.f32 %v1177, %v1242
        %v1275 = vadd.f32 %v1178, %v1243
        %v1276 = vadd.f32 %v1179, %v1244
        %v1277 = vadd.f32 %v1180, %v1245
        %v1278 = vadd.f32 %v1181, %v1246
        %v1279 = vadd.f32 %v1182, %v1247
        %v1280 = vadd.f32 %v1183, %v1248
        %v1281 = vadd.f32 %v1184, %v1249
        %v1282 = vadd.f32 %v1185, %v1250
        %v1283 = vadd.f32 %v1186, %v1251
        %v1284 = vld [vmem:[%s860 + $0x1] sm:$0xff]
        %v1285 = vld [vmem:[%s860 + $0x9] sm:$0xff]
        %v1286 = vld [vmem:[%s860 + $0x19] sm:$0xff]
        %v1287 = vld [vmem:[%s860 + $0x21] sm:$0xff]
        %v1288 = vld [vmem:[%s860 + $0x31] sm:$0xff]
        %v1289 = vld [vmem:[%s860 + $0x39] sm:$0xff]
        %v1290 = vld [vmem:[%s860 + $0x49] sm:$0xff]
        %v1291 = vld [vmem:[%s860 + $0x51] sm:$0xff]
        %v1292 = vld [vmem:[%s860 + $0x61] sm:$0xff]
        %v1293 = vld [vmem:[%s860 + $0x69] sm:$0xff]
        %v1294 = vld [vmem:[%s860 + $0x79] sm:$0xff]
        %v1295 = vld [vmem:[%s860 + $0x81] sm:$0xff]
        %v1296 = vld [vmem:[%s860 + $0x91] sm:$0xff]
        %v1297 = vld [vmem:[%s860 + $0x99] sm:$0xff]
        %v1298 = vld [vmem:[%s860 + $0xa9] sm:$0xff]
        %v1299 = vld [vmem:[%s860 + $0xb1] sm:$0xff]
        %v1300 = vld [vmem:[%s860 + $0xc1] sm:$0xff]
        %v1301 = vld [vmem:[%s860 + $0xc9] sm:$0xff]
        %v1302 = vld [vmem:[%s860 + $0xd9] sm:$0xff]
        %v1303 = vld [vmem:[%s860 + $0xe1] sm:$0xff]
        %v1304 = vld [vmem:[%s860 + $0xf1] sm:$0xff]
        %v1305 = vld [vmem:[%s860 + $0xf9] sm:$0xff]
        %v1306 = vld [vmem:[%s860 + $0x109] sm:$0xff]
        %v1307 = vld [vmem:[%s860 + $0x111] sm:$0xff]
        %v1308 = vld [vmem:[%s860 + $0x121] sm:$0xff]
        %v1309 = vld [vmem:[%s860 + $0x129] sm:$0xff]
        %v1310 = vld [vmem:[%s860 + $0x139] sm:$0xff]
        %v1311 = vld [vmem:[%s860 + $0x141] sm:$0xff]
        %v1312 = vld [vmem:[%s860 + $0x151] sm:$0xff]
        %v1313 = vld [vmem:[%s860 + $0x159] sm:$0xff]
        %v1314 = vld [vmem:[%s860 + $0x169] sm:$0xff]
        %v1315 = vld [vmem:[%s860 + $0x171] sm:$0xff]
        %v1316 = vperm.slane %v894, 1
        %v1317 = vmul.f32 %v1284, %v1316
        %v1318 = vmul.f32 %v1285, %v1316
        %v1319 = vmul.f32 %v1286, %v1316
        %v1320 = vmul.f32 %v1287, %v1316
        %v1321 = vmul.f32 %v1288, %v1316
        %v1322 = vmul.f32 %v1289, %v1316
        %v1323 = vmul.f32 %v1290, %v1316
        %v1324 = vmul.f32 %v1291, %v1316
        %v1325 = vmul.f32 %v1292, %v1316
        %v1326 = vmul.f32 %v1293, %v1316
        %v1327 = vmul.f32 %v1294, %v1316
        %v1328 = vmul.f32 %v1295, %v1316
        %v1329 = vmul.f32 %v1296, %v1316
        %v1330 = vmul.f32 %v1297, %v1316
        %v1331 = vmul.f32 %v1298, %v1316
        %v1332 = vmul.f32 %v1299, %v1316
        %v1333 = vmul.f32 %v1300, %v1316
        %v1334 = vmul.f32 %v1301, %v1316
        %v1335 = vmul.f32 %v1302, %v1316
        %v1336 = vmul.f32 %v1303, %v1316
        %v1337 = vmul.f32 %v1304, %v1316
        %v1338 = vmul.f32 %v1305, %v1316
        %v1339 = vmul.f32 %v1306, %v1316
        %v1340 = vmul.f32 %v1307, %v1316
        %v1341 = vmul.f32 %v1308, %v1316
        %v1342 = vmul.f32 %v1309, %v1316
        %v1343 = vmul.f32 %v1310, %v1316
        %v1344 = vmul.f32 %v1311, %v1316
        %v1345 = vmul.f32 %v1312, %v1316
        %v1346 = vmul.f32 %v1313, %v1316
        %v1347 = vmul.f32 %v1314, %v1316
        %v1348 = vmul.f32 %v1315, %v1316
        %v1349 = vadd.f32 %v1252, %v1317
        %v1350 = vadd.f32 %v1253, %v1318
        %v1351 = vadd.f32 %v1254, %v1319
        %v1352 = vadd.f32 %v1255, %v1320
        %v1353 = vadd.f32 %v1256, %v1321
        %v1354 = vadd.f32 %v1257, %v1322
        %v1355 = vadd.f32 %v1258, %v1323
        %v1356 = vadd.f32 %v1259, %v1324
        %v1357 = vadd.f32 %v1260, %v1325
        %v1358 = vadd.f32 %v1261, %v1326
        %v1359 = vadd.f32 %v1262, %v1327
        %v1360 = vadd.f32 %v1263, %v1328
        %v1361 = vadd.f32 %v1264, %v1329
        %v1362 = vadd.f32 %v1265, %v1330
        %v1363 = vadd.f32 %v1266, %v1331
        %v1364 = vadd.f32 %v1267, %v1332
        %v1365 = vadd.f32 %v1268, %v1333
        %v1366 = vadd.f32 %v1269, %v1334
        %v1367 = vadd.f32 %v1270, %v1335
        %v1368 = vadd.f32 %v1271, %v1336
        %v1369 = vadd.f32 %v1272, %v1337
        %v1370 = vadd.f32 %v1273, %v1338
        %v1371 = vadd.f32 %v1274, %v1339
        %v1372 = vadd.f32 %v1275, %v1340
        %v1373 = vadd.f32 %v1276, %v1341
        %v1374 = vadd.f32 %v1277, %v1342
        %v1375 = vadd.f32 %v1278, %v1343
        %v1376 = vadd.f32 %v1279, %v1344
        %v1377 = vadd.f32 %v1280, %v1345
        %v1378 = vadd.f32 %v1281, %v1346
        %v1379 = vadd.f32 %v1282, %v1347
        %v1380 = vadd.f32 %v1283, %v1348
        %v1381 = vld [vmem:[%s860 + $0x2] sm:$0xff]
        %v1382 = vld [vmem:[%s860 + $0xa] sm:$0xff]
        %v1383 = vld [vmem:[%s860 + $0x1a] sm:$0xff]
        %v1384 = vld [vmem:[%s860 + $0x22] sm:$0xff]
        %v1385 = vld [vmem:[%s860 + $0x32] sm:$0xff]
        %v1386 = vld [vmem:[%s860 + $0x3a] sm:$0xff]
        %v1387 = vld [vmem:[%s860 + $0x4a] sm:$0xff]
        %v1388 = vld [vmem:[%s860 + $0x52] sm:$0xff]
        %v1389 = vld [vmem:[%s860 + $0x62] sm:$0xff]
        %v1390 = vld [vmem:[%s860 + $0x6a] sm:$0xff]
        %v1391 = vld [vmem:[%s860 + $0x7a] sm:$0xff]
        %v1392 = vld [vmem:[%s860 + $0x82] sm:$0xff]
        %v1393 = vld [vmem:[%s860 + $0x92] sm:$0xff]
        %v1394 = vld [vmem:[%s860 + $0x9a] sm:$0xff]
        %v1395 = vld [vmem:[%s860 + $0xaa] sm:$0xff]
        %v1396 = vld [vmem:[%s860 + $0xb2] sm:$0xff]
        %v1397 = vld [vmem:[%s860 + $0xc2] sm:$0xff]
        %v1398 = vld [vmem:[%s860 + $0xca] sm:$0xff]
        %v1399 = vld [vmem:[%s860 + $0xda] sm:$0xff]
        %v1400 = vld [vmem:[%s860 + $0xe2] sm:$0xff]
        %v1401 = vld [vmem:[%s860 + $0xf2] sm:$0xff]
        %v1402 = vld [vmem:[%s860 + $0xfa] sm:$0xff]
        %v1403 = vld [vmem:[%s860 + $0x10a] sm:$0xff]
        %v1404 = vld [vmem:[%s860 + $0x112] sm:$0xff]
        %v1405 = vld [vmem:[%s860 + $0x122] sm:$0xff]
        %v1406 = vld [vmem:[%s860 + $0x12a] sm:$0xff]
        %v1407 = vld [vmem:[%s860 + $0x13a] sm:$0xff]
        %v1408 = vld [vmem:[%s860 + $0x142] sm:$0xff]
        %v1409 = vld [vmem:[%s860 + $0x152] sm:$0xff]
        %v1410 = vld [vmem:[%s860 + $0x15a] sm:$0xff]
        %v1411 = vld [vmem:[%s860 + $0x16a] sm:$0xff]
        %v1412 = vld [vmem:[%s860 + $0x172] sm:$0xff]
        %v1413 = vperm.slane %v894, 2
        %v1414 = vmul.f32 %v1381, %v1413
        %v1415 = vmul.f32 %v1382, %v1413
        %v1416 = vmul.f32 %v1383, %v1413
        %v1417 = vmul.f32 %v1384, %v1413
        %v1418 = vmul.f32 %v1385, %v1413
        %v1419 = vmul.f32 %v1386, %v1413
        %v1420 = vmul.f32 %v1387, %v1413
        %v1421 = vmul.f32 %v1388, %v1413
        %v1422 = vmul.f32 %v1389, %v1413
        %v1423 = vmul.f32 %v1390, %v1413
        %v1424 = vmul.f32 %v1391, %v1413
        %v1425 = vmul.f32 %v1392, %v1413
        %v1426 = vmul.f32 %v1393, %v1413
        %v1427 = vmul.f32 %v1394, %v1413
        %v1428 = vmul.f32 %v1395, %v1413
        %v1429 = vmul.f32 %v1396, %v1413
        %v1430 = vmul.f32 %v1397, %v1413
        %v1431 = vmul.f32 %v1398, %v1413
        %v1432 = vmul.f32 %v1399, %v1413
        %v1433 = vmul.f32 %v1400, %v1413
        %v1434 = vmul.f32 %v1401, %v1413
        %v1435 = vmul.f32 %v1402, %v1413
        %v1436 = vmul.f32 %v1403, %v1413
        %v1437 = vmul.f32 %v1404, %v1413
        %v1438 = vmul.f32 %v1405, %v1413
        %v1439 = vmul.f32 %v1406, %v1413
        %v1440 = vmul.f32 %v1407, %v1413
        %v1441 = vmul.f32 %v1408, %v1413
        %v1442 = vmul.f32 %v1409, %v1413
        %v1443 = vmul.f32 %v1410, %v1413
        %v1444 = vmul.f32 %v1411, %v1413
        %v1445 = vmul.f32 %v1412, %v1413
        %v1446 = vadd.f32 %v1349, %v1414
        %v1447 = vadd.f32 %v1350, %v1415
        %v1448 = vadd.f32 %v1351, %v1416
        %v1449 = vadd.f32 %v1352, %v1417
        %v1450 = vadd.f32 %v1353, %v1418
        %v1451 = vadd.f32 %v1354, %v1419
        %v1452 = vadd.f32 %v1355, %v1420
        %v1453 = vadd.f32 %v1356, %v1421
        %v1454 = vadd.f32 %v1357, %v1422
        %v1455 = vadd.f32 %v1358, %v1423
        %v1456 = vadd.f32 %v1359, %v1424
        %v1457 = vadd.f32 %v1360, %v1425
        %v1458 = vadd.f32 %v1361, %v1426
        %v1459 = vadd.f32 %v1362, %v1427
        %v1460 = vadd.f32 %v1363, %v1428
        %v1461 = vadd.f32 %v1364, %v1429
        %v1462 = vadd.f32 %v1365, %v1430
        %v1463 = vadd.f32 %v1366, %v1431
        %v1464 = vadd.f32 %v1367, %v1432
        %v1465 = vadd.f32 %v1368, %v1433
        %v1466 = vadd.f32 %v1369, %v1434
        %v1467 = vadd.f32 %v1370, %v1435
        %v1468 = vadd.f32 %v1371, %v1436
        %v1469 = vadd.f32 %v1372, %v1437
        %v1470 = vadd.f32 %v1373, %v1438
        %v1471 = vadd.f32 %v1374, %v1439
        %v1472 = vadd.f32 %v1375, %v1440
        %v1473 = vadd.f32 %v1376, %v1441
        %v1474 = vadd.f32 %v1377, %v1442
        %v1475 = vadd.f32 %v1378, %v1443
        %v1476 = vadd.f32 %v1379, %v1444
        %v1477 = vadd.f32 %v1380, %v1445
        %s1478 = scalar_lea.vmem [#allocation2], 48
        %v1479 = vld [vmem:[%s1478] sm:$0xff]
        %v1480 = vld [vmem:[%s1478 + $0x8] sm:$0xff]
        %v1481 = vld [vmem:[%s1478 + $0x18] sm:$0xff]
        %v1482 = vld [vmem:[%s1478 + $0x20] sm:$0xff]
        %v1483 = vld [vmem:[%s1478 + $0x30] sm:$0xff]
        %v1484 = vld [vmem:[%s1478 + $0x38] sm:$0xff]
        %v1485 = vld [vmem:[%s1478 + $0x48] sm:$0xff]
        %v1486 = vld [vmem:[%s1478 + $0x50] sm:$0xff]
        %v1487 = vld [vmem:[%s1478 + $0x60] sm:$0xff]
        %v1488 = vld [vmem:[%s1478 + $0x68] sm:$0xff]
        %v1489 = vld [vmem:[%s1478 + $0x78] sm:$0xff]
        %v1490 = vld [vmem:[%s1478 + $0x80] sm:$0xff]
        %v1491 = vld [vmem:[%s1478 + $0x90] sm:$0xff]
        %v1492 = vld [vmem:[%s1478 + $0x98] sm:$0xff]
        %v1493 = vld [vmem:[%s1478 + $0xa8] sm:$0xff]
        %v1494 = vld [vmem:[%s1478 + $0xb0] sm:$0xff]
        %v1495 = vld [vmem:[%s1478 + $0xc0] sm:$0xff]
        %v1496 = vld [vmem:[%s1478 + $0xc8] sm:$0xff]
        %v1497 = vld [vmem:[%s1478 + $0xd8] sm:$0xff]
        %v1498 = vld [vmem:[%s1478 + $0xe0] sm:$0xff]
        %v1499 = vld [vmem:[%s1478 + $0xf0] sm:$0xff]
        %v1500 = vld [vmem:[%s1478 + $0xf8] sm:$0xff]
        %v1501 = vld [vmem:[%s1478 + $0x108] sm:$0xff]
        %v1502 = vld [vmem:[%s1478 + $0x110] sm:$0xff]
        %v1503 = vld [vmem:[%s1478 + $0x120] sm:$0xff]
        %v1504 = vld [vmem:[%s1478 + $0x128] sm:$0xff]
        %v1505 = vld [vmem:[%s1478 + $0x138] sm:$0xff]
        %v1506 = vld [vmem:[%s1478 + $0x140] sm:$0xff]
        %v1507 = vld [vmem:[%s1478 + $0x150] sm:$0xff]
        %v1508 = vld [vmem:[%s1478 + $0x158] sm:$0xff]
        %v1509 = vld [vmem:[%s1478 + $0x168] sm:$0xff]
        %v1510 = vld [vmem:[%s1478 + $0x170] sm:$0xff]
        %v1511 = vperm.slane %v895, 0
        %v1512 = vmul.f32 %v1479, %v1511
        %v1513 = vmul.f32 %v1480, %v1511
        %v1514 = vmul.f32 %v1481, %v1511
        %v1515 = vmul.f32 %v1482, %v1511
        %v1516 = vmul.f32 %v1483, %v1511
        %v1517 = vmul.f32 %v1484, %v1511
        %v1518 = vmul.f32 %v1485, %v1511
        %v1519 = vmul.f32 %v1486, %v1511
        %v1520 = vmul.f32 %v1487, %v1511
        %v1521 = vmul.f32 %v1488, %v1511
        %v1522 = vmul.f32 %v1489, %v1511
        %v1523 = vmul.f32 %v1490, %v1511
        %v1524 = vmul.f32 %v1491, %v1511
        %v1525 = vmul.f32 %v1492, %v1511
        %v1526 = vmul.f32 %v1493, %v1511
        %v1527 = vmul.f32 %v1494, %v1511
        %v1528 = vmul.f32 %v1495, %v1511
        %v1529 = vmul.f32 %v1496, %v1511
        %v1530 = vmul.f32 %v1497, %v1511
        %v1531 = vmul.f32 %v1498, %v1511
        %v1532 = vmul.f32 %v1499, %v1511
        %v1533 = vmul.f32 %v1500, %v1511
        %v1534 = vmul.f32 %v1501, %v1511
        %v1535 = vmul.f32 %v1502, %v1511
        %v1536 = vmul.f32 %v1503, %v1511
        %v1537 = vmul.f32 %v1504, %v1511
        %v1538 = vmul.f32 %v1505, %v1511
        %v1539 = vmul.f32 %v1506, %v1511
        %v1540 = vmul.f32 %v1507, %v1511
        %v1541 = vmul.f32 %v1508, %v1511
        %v1542 = vmul.f32 %v1509, %v1511
        %v1543 = vmul.f32 %v1510, %v1511
        %v1544 = vadd.f32 %v1446, %v1512
        %v1545 = vadd.f32 %v1447, %v1513
        %v1546 = vadd.f32 %v1448, %v1514
        %v1547 = vadd.f32 %v1449, %v1515
        %v1548 = vadd.f32 %v1450, %v1516
        %v1549 = vadd.f32 %v1451, %v1517
        %v1550 = vadd.f32 %v1452, %v1518
        %v1551 = vadd.f32 %v1453, %v1519
        %v1552 = vadd.f32 %v1454, %v1520
        %v1553 = vadd.f32 %v1455, %v1521
        %v1554 = vadd.f32 %v1456, %v1522
        %v1555 = vadd.f32 %v1457, %v1523
        %v1556 = vadd.f32 %v1458, %v1524
        %v1557 = vadd.f32 %v1459, %v1525
        %v1558 = vadd.f32 %v1460, %v1526
        %v1559 = vadd.f32 %v1461, %v1527
        %v1560 = vadd.f32 %v1462, %v1528
        %v1561 = vadd.f32 %v1463, %v1529
        %v1562 = vadd.f32 %v1464, %v1530
        %v1563 = vadd.f32 %v1465, %v1531
        %v1564 = vadd.f32 %v1466, %v1532
        %v1565 = vadd.f32 %v1467, %v1533
        %v1566 = vadd.f32 %v1468, %v1534
        %v1567 = vadd.f32 %v1469, %v1535
        %v1568 = vadd.f32 %v1470, %v1536
        %v1569 = vadd.f32 %v1471, %v1537
        %v1570 = vadd.f32 %v1472, %v1538
        %v1571 = vadd.f32 %v1473, %v1539
        %v1572 = vadd.f32 %v1474, %v1540
        %v1573 = vadd.f32 %v1475, %v1541
        %v1574 = vadd.f32 %v1476, %v1542
        %v1575 = vadd.f32 %v1477, %v1543
        %v1576 = vld [vmem:[%s1478 + $0x1] sm:$0xff]
        %v1577 = vld [vmem:[%s1478 + $0x9] sm:$0xff]
        %v1578 = vld [vmem:[%s1478 + $0x19] sm:$0xff]
        %v1579 = vld [vmem:[%s1478 + $0x21] sm:$0xff]
        %v1580 = vld [vmem:[%s1478 + $0x31] sm:$0xff]
        %v1581 = vld [vmem:[%s1478 + $0x39] sm:$0xff]
        %v1582 = vld [vmem:[%s1478 + $0x49] sm:$0xff]
        %v1583 = vld [vmem:[%s1478 + $0x51] sm:$0xff]
        %v1584 = vld [vmem:[%s1478 + $0x61] sm:$0xff]
        %v1585 = vld [vmem:[%s1478 + $0x69] sm:$0xff]
        %v1586 = vld [vmem:[%s1478 + $0x79] sm:$0xff]
        %v1587 = vld [vmem:[%s1478 + $0x81] sm:$0xff]
        %v1588 = vld [vmem:[%s1478 + $0x91] sm:$0xff]
        %v1589 = vld [vmem:[%s1478 + $0x99] sm:$0xff]
        %v1590 = vld [vmem:[%s1478 + $0xa9] sm:$0xff]
        %v1591 = vld [vmem:[%s1478 + $0xb1] sm:$0xff]
        %v1592 = vld [vmem:[%s1478 + $0xc1] sm:$0xff]
        %v1593 = vld [vmem:[%s1478 + $0xc9] sm:$0xff]
        %v1594 = vld [vmem:[%s1478 + $0xd9] sm:$0xff]
        %v1595 = vld [vmem:[%s1478 + $0xe1] sm:$0xff]
        %v1596 = vld [vmem:[%s1478 + $0xf1] sm:$0xff]
        %v1597 = vld [vmem:[%s1478 + $0xf9] sm:$0xff]
        %v1598 = vld [vmem:[%s1478 + $0x109] sm:$0xff]
        %v1599 = vld [vmem:[%s1478 + $0x111] sm:$0xff]
        %v1600 = vld [vmem:[%s1478 + $0x121] sm:$0xff]
        %v1601 = vld [vmem:[%s1478 + $0x129] sm:$0xff]
        %v1602 = vld [vmem:[%s1478 + $0x139] sm:$0xff]
        %v1603 = vld [vmem:[%s1478 + $0x141] sm:$0xff]
        %v1604 = vld [vmem:[%s1478 + $0x151] sm:$0xff]
        %v1605 = vld [vmem:[%s1478 + $0x159] sm:$0xff]
        %v1606 = vld [vmem:[%s1478 + $0x169] sm:$0xff]
        %v1607 = vld [vmem:[%s1478 + $0x171] sm:$0xff]
        %v1608 = vperm.slane %v895, 1
        %v1609 = vmul.f32 %v1576, %v1608
        %v1610 = vmul.f32 %v1577, %v1608
        %v1611 = vmul.f32 %v1578, %v1608
        %v1612 = vmul.f32 %v1579, %v1608
        %v1613 = vmul.f32 %v1580, %v1608
        %v1614 = vmul.f32 %v1581, %v1608
        %v1615 = vmul.f32 %v1582, %v1608
        %v1616 = vmul.f32 %v1583, %v1608
        %v1617 = vmul.f32 %v1584, %v1608
        %v1618 = vmul.f32 %v1585, %v1608
        %v1619 = vmul.f32 %v1586, %v1608
        %v1620 = vmul.f32 %v1587, %v1608
        %v1621 = vmul.f32 %v1588, %v1608
        %v1622 = vmul.f32 %v1589, %v1608
        %v1623 = vmul.f32 %v1590, %v1608
        %v1624 = vmul.f32 %v1591, %v1608
        %v1625 = vmul.f32 %v1592, %v1608
        %v1626 = vmul.f32 %v1593, %v1608
        %v1627 = vmul.f32 %v1594, %v1608
        %v1628 = vmul.f32 %v1595, %v1608
        %v1629 = vmul.f32 %v1596, %v1608
        %v1630 = vmul.f32 %v1597, %v1608
        %v1631 = vmul.f32 %v1598, %v1608
        %v1632 = vmul.f32 %v1599, %v1608
        %v1633 = vmul.f32 %v1600, %v1608
        %v1634 = vmul.f32 %v1601, %v1608
        %v1635 = vmul.f32 %v1602, %v1608
        %v1636 = vmul.f32 %v1603, %v1608
        %v1637 = vmul.f32 %v1604, %v1608
        %v1638 = vmul.f32 %v1605, %v1608
        %v1639 = vmul.f32 %v1606, %v1608
        %v1640 = vmul.f32 %v1607, %v1608
        %v1641 = vadd.f32 %v1544, %v1609
        %v1642 = vadd.f32 %v1545, %v1610
        %v1643 = vadd.f32 %v1546, %v1611
        %v1644 = vadd.f32 %v1547, %v1612
        %v1645 = vadd.f32 %v1548, %v1613
        %v1646 = vadd.f32 %v1549, %v1614
        %v1647 = vadd.f32 %v1550, %v1615
        %v1648 = vadd.f32 %v1551, %v1616
        %v1649 = vadd.f32 %v1552, %v1617
        %v1650 = vadd.f32 %v1553, %v1618
        %v1651 = vadd.f32 %v1554, %v1619
        %v1652 = vadd.f32 %v1555, %v1620
        %v1653 = vadd.f32 %v1556, %v1621
        %v1654 = vadd.f32 %v1557, %v1622
        %v1655 = vadd.f32 %v1558, %v1623
        %v1656 = vadd.f32 %v1559, %v1624
        %v1657 = vadd.f32 %v1560, %v1625
        %v1658 = vadd.f32 %v1561, %v1626
        %v1659 = vadd.f32 %v1562, %v1627
        %v1660 = vadd.f32 %v1563, %v1628
        %v1661 = vadd.f32 %v1564, %v1629
        %v1662 = vadd.f32 %v1565, %v1630
        %v1663 = vadd.f32 %v1566, %v1631
        %v1664 = vadd.f32 %v1567, %v1632
        %v1665 = vadd.f32 %v1568, %v1633
        %v1666 = vadd.f32 %v1569, %v1634
        %v1667 = vadd.f32 %v1570, %v1635
        %v1668 = vadd.f32 %v1571, %v1636
        %v1669 = vadd.f32 %v1572, %v1637
        %v1670 = vadd.f32 %v1573, %v1638
        %v1671 = vadd.f32 %v1574, %v1639
        %v1672 = vadd.f32 %v1575, %v1640
        %v1673 = vld [vmem:[%s1478 + $0x2] sm:$0xff]
        %v1674 = vld [vmem:[%s1478 + $0xa] sm:$0xff]
        %v1675 = vld [vmem:[%s1478 + $0x1a] sm:$0xff]
        %v1676 = vld [vmem:[%s1478 + $0x22] sm:$0xff]
        %v1677 = vld [vmem:[%s1478 + $0x32] sm:$0xff]
        %v1678 = vld [vmem:[%s1478 + $0x3a] sm:$0xff]
        %v1679 = vld [vmem:[%s1478 + $0x4a] sm:$0xff]
        %v1680 = vld [vmem:[%s1478 + $0x52] sm:$0xff]
        %v1681 = vld [vmem:[%s1478 + $0x62] sm:$0xff]
        %v1682 = vld [vmem:[%s1478 + $0x6a] sm:$0xff]
        %v1683 = vld [vmem:[%s1478 + $0x7a] sm:$0xff]
        %v1684 = vld [vmem:[%s1478 + $0x82] sm:$0xff]
        %v1685 = vld [vmem:[%s1478 + $0x92] sm:$0xff]
        %v1686 = vld [vmem:[%s1478 + $0x9a] sm:$0xff]
        %v1687 = vld [vmem:[%s1478 + $0xaa] sm:$0xff]
        %v1688 = vld [vmem:[%s1478 + $0xb2] sm:$0xff]
        %v1689 = vld [vmem:[%s1478 + $0xc2] sm:$0xff]
        %v1690 = vld [vmem:[%s1478 + $0xca] sm:$0xff]
        %v1691 = vld [vmem:[%s1478 + $0xda] sm:$0xff]
        %v1692 = vld [vmem:[%s1478 + $0xe2] sm:$0xff]
        %v1693 = vld [vmem:[%s1478 + $0xf2] sm:$0xff]
        %v1694 = vld [vmem:[%s1478 + $0xfa] sm:$0xff]
        %v1695 = vld [vmem:[%s1478 + $0x10a] sm:$0xff]
        %v1696 = vld [vmem:[%s1478 + $0x112] sm:$0xff]
        %v1697 = vld [vmem:[%s1478 + $0x122] sm:$0xff]
        %v1698 = vld [vmem:[%s1478 + $0x12a] sm:$0xff]
        %v1699 = vld [vmem:[%s1478 + $0x13a] sm:$0xff]
        %v1700 = vld [vmem:[%s1478 + $0x142] sm:$0xff]
        %v1701 = vld [vmem:[%s1478 + $0x152] sm:$0xff]
        %v1702 = vld [vmem:[%s1478 + $0x15a] sm:$0xff]
        %v1703 = vld [vmem:[%s1478 + $0x16a] sm:$0xff]
        %v1704 = vld [vmem:[%s1478 + $0x172] sm:$0xff]
        %v1705 = vperm.slane %v895, 2
        %v1706 = vmul.f32 %v1673, %v1705
        %v1707 = vmul.f32 %v1674, %v1705
        %v1708 = vmul.f32 %v1675, %v1705
        %v1709 = vmul.f32 %v1676, %v1705
        %v1710 = vmul.f32 %v1677, %v1705
        %v1711 = vmul.f32 %v1678, %v1705
        %v1712 = vmul.f32 %v1679, %v1705
        %v1713 = vmul.f32 %v1680, %v1705
        %v1714 = vmul.f32 %v1681, %v1705
        %v1715 = vmul.f32 %v1682, %v1705
        %v1716 = vmul.f32 %v1683, %v1705
        %v1717 = vmul.f32 %v1684, %v1705
        %v1718 = vmul.f32 %v1685, %v1705
        %v1719 = vmul.f32 %v1686, %v1705
        %v1720 = vmul.f32 %v1687, %v1705
        %v1721 = vmul.f32 %v1688, %v1705
        %v1722 = vmul.f32 %v1689, %v1705
        %v1723 = vmul.f32 %v1690, %v1705
        %v1724 = vmul.f32 %v1691, %v1705
        %v1725 = vmul.f32 %v1692, %v1705
        %v1726 = vmul.f32 %v1693, %v1705
        %v1727 = vmul.f32 %v1694, %v1705
        %v1728 = vmul.f32 %v1695, %v1705
        %v1729 = vmul.f32 %v1696, %v1705
        %v1730 = vmul.f32 %v1697, %v1705
        %v1731 = vmul.f32 %v1698, %v1705
        %v1732 = vmul.f32 %v1699, %v1705
        %v1733 = vmul.f32 %v1700, %v1705
        %v1734 = vmul.f32 %v1701, %v1705
        %v1735 = vmul.f32 %v1702, %v1705
        %v1736 = vmul.f32 %v1703, %v1705
        %v1737 = vmul.f32 %v1704, %v1705
        %v1738 = vadd.f32 %v1641, %v1706
        %v1739 = vadd.f32 %v1642, %v1707
        %v1740 = vadd.f32 %v1643, %v1708
        %v1741 = vadd.f32 %v1644, %v1709
        %v1742 = vadd.f32 %v1645, %v1710
        %v1743 = vadd.f32 %v1646, %v1711
        %v1744 = vadd.f32 %v1647, %v1712
        %v1745 = vadd.f32 %v1648, %v1713
        %v1746 = vadd.f32 %v1649, %v1714
        %v1747 = vadd.f32 %v1650, %v1715
        %v1748 = vadd.f32 %v1651, %v1716
        %v1749 = vadd.f32 %v1652, %v1717
        %v1750 = vadd.f32 %v1653, %v1718
        %v1751 = vadd.f32 %v1654, %v1719
        %v1752 = vadd.f32 %v1655, %v1720
        %v1753 = vadd.f32 %v1656, %v1721
        %v1754 = vadd.f32 %v1657, %v1722
        %v1755 = vadd.f32 %v1658, %v1723
        %v1756 = vadd.f32 %v1659, %v1724
        %v1757 = vadd.f32 %v1660, %v1725
        %v1758 = vadd.f32 %v1661, %v1726
        %v1759 = vadd.f32 %v1662, %v1727
        %v1760 = vadd.f32 %v1663, %v1728
        %v1761 = vadd.f32 %v1664, %v1729
        %v1762 = vadd.f32 %v1665, %v1730
        %v1763 = vadd.f32 %v1666, %v1731
        %v1764 = vadd.f32 %v1667, %v1732
        %v1765 = vadd.f32 %v1668, %v1733
        %v1766 = vadd.f32 %v1669, %v1734
        %v1767 = vadd.f32 %v1670, %v1735
        %v1768 = vadd.f32 %v1671, %v1736
        %v1769 = vadd.f32 %v1672, %v1737
        %v1770 = vld [vmem:[%s4] sm:$0x1]
        %v1772 = vperm.slane %v1770, 0
        %v1774 = vadd.f32 %v1738, %v1772
        %v1775 = vadd.f32 %v1739, %v1772
        %v1776 = vadd.f32 %v1740, %v1772
        %v1777 = vadd.f32 %v1741, %v1772
        %v1778 = vadd.f32 %v1742, %v1772
        %v1779 = vadd.f32 %v1743, %v1772
        %v1780 = vadd.f32 %v1744, %v1772
        %v1781 = vadd.f32 %v1745, %v1772
        %v1782 = vadd.f32 %v1746, %v1772
        %v1783 = vadd.f32 %v1747, %v1772
        %v1784 = vadd.f32 %v1748, %v1772
        %v1785 = vadd.f32 %v1749, %v1772
        %v1786 = vadd.f32 %v1750, %v1772
        %v1787 = vadd.f32 %v1751, %v1772
        %v1788 = vadd.f32 %v1752, %v1772
        %v1789 = vadd.f32 %v1753, %v1772
        %v1790 = vadd.f32 %v1754, %v1772
        %v1791 = vadd.f32 %v1755, %v1772
        %v1792 = vadd.f32 %v1756, %v1772
        %v1793 = vadd.f32 %v1757, %v1772
        %v1794 = vadd.f32 %v1758, %v1772
        %v1795 = vadd.f32 %v1759, %v1772
        %v1796 = vadd.f32 %v1760, %v1772
        %v1797 = vadd.f32 %v1761, %v1772
        %v1798 = vadd.f32 %v1762, %v1772
        %v1799 = vadd.f32 %v1763, %v1772
        %v1800 = vadd.f32 %v1764, %v1772
        %v1801 = vadd.f32 %v1765, %v1772
        %v1802 = vadd.f32 %v1766, %v1772
        %v1803 = vadd.f32 %v1767, %v1772
        %v1804 = vadd.f32 %v1768, %v1772
        %v1805 = vadd.f32 %v1769, %v1772
        %v1806 = vsub.f32 0.0, %v1774
        %v1807 = vsub.f32 0.0, %v1775
        %v1808 = vsub.f32 0.0, %v1776
        %v1809 = vsub.f32 0.0, %v1777
        %v1810 = vsub.f32 0.0, %v1778
        %v1811 = vsub.f32 0.0, %v1779
        %v1812 = vsub.f32 0.0, %v1780
        %v1813 = vsub.f32 0.0, %v1781
        %v1814 = vsub.f32 0.0, %v1782
        %v1815 = vsub.f32 0.0, %v1783
        %v1816 = vsub.f32 0.0, %v1784
        %v1817 = vsub.f32 0.0, %v1785
        %v1818 = vsub.f32 0.0, %v1786
        %v1819 = vsub.f32 0.0, %v1787
        %v1820 = vsub.f32 0.0, %v1788
        %v1821 = vsub.f32 0.0, %v1789
        %v1822 = vsub.f32 0.0, %v1790
        %v1823 = vsub.f32 0.0, %v1791
        %v1824 = vsub.f32 0.0, %v1792
        %v1825 = vsub.f32 0.0, %v1793
        %v1826 = vsub.f32 0.0, %v1794
        %v1827 = vsub.f32 0.0, %v1795
        %v1828 = vsub.f32 0.0, %v1796
        %v1829 = vsub.f32 0.0, %v1797
        %v1830 = vsub.f32 0.0, %v1798
        %v1831 = vsub.f32 0.0, %v1799
        %v1832 = vsub.f32 0.0, %v1800
        %v1833 = vsub.f32 0.0, %v1801
        %v1834 = vsub.f32 0.0, %v1802
        %v1835 = vsub.f32 0.0, %v1803
        %v1836 = vsub.f32 0.0, %v1804
        %v1837 = vsub.f32 0.0, %v1805
        %v1838 = vmul.f32 %v1806, 1.442695
        %v1839 = vpow.pop %v1838
        %v1840 = vmul.f32 %v1807, 1.442695
        %v1841 = vpow.pop %v1840
        %v1842 = vmul.f32 %v1808, 1.442695
        %v1843 = vpow.pop %v1842
        %v1844 = vmul.f32 %v1809, 1.442695
        %v1845 = vpow.pop %v1844
        %v1846 = vmul.f32 %v1810, 1.442695
        %v1847 = vpow.pop %v1846
        %v1848 = vmul.f32 %v1811, 1.442695
        %v1849 = vpow.pop %v1848
        %v1850 = vmul.f32 %v1812, 1.442695
        %v1851 = vpow.pop %v1850
        %v1852 = vmul.f32 %v1813, 1.442695
        %v1853 = vpow.pop %v1852
        %v1854 = vmul.f32 %v1814, 1.442695
        %v1855 = vpow.pop %v1854
        %v1856 = vmul.f32 %v1815, 1.442695
        %v1857 = vpow.pop %v1856
        %v1858 = vmul.f32 %v1816, 1.442695
        %v1859 = vpow.pop %v1858
        %v1860 = vmul.f32 %v1817, 1.442695
        %v1861 = vpow.pop %v1860
        %v1862 = vmul.f32 %v1818, 1.442695
        %v1863 = vpow.pop %v1862
        %v1864 = vmul.f32 %v1819, 1.442695
        %v1865 = vpow.pop %v1864
        %v1866 = vmul.f32 %v1820, 1.442695
        %v1867 = vpow.pop %v1866
        %v1868 = vmul.f32 %v1821, 1.442695
        %v1869 = vpow.pop %v1868
        %v1870 = vmul.f32 %v1822, 1.442695
        %v1871 = vpow.pop %v1870
        %v1872 = vmul.f32 %v1823, 1.442695
        %v1873 = vpow.pop %v1872
        %v1874 = vmul.f32 %v1824, 1.442695
        %v1875 = vpow.pop %v1874
        %v1876 = vmul.f32 %v1825, 1.442695
        %v1877 = vpow.pop %v1876
        %v1878 = vmul.f32 %v1826, 1.442695
        %v1879 = vpow.pop %v1878
        %v1880 = vmul.f32 %v1827, 1.442695
        %v1881 = vpow.pop %v1880
        %v1882 = vmul.f32 %v1828, 1.442695
        %v1883 = vpow.pop %v1882
        %v1884 = vmul.f32 %v1829, 1.442695
        %v1885 = vpow.pop %v1884
        %v1886 = vmul.f32 %v1830, 1.442695
        %v1887 = vpow.pop %v1886
        %v1888 = vmul.f32 %v1831, 1.442695
        %v1889 = vpow.pop %v1888
        %v1890 = vmul.f32 %v1832, 1.442695
        %v1891 = vpow.pop %v1890
        %v1892 = vmul.f32 %v1833, 1.442695
        %v1893 = vpow.pop %v1892
        %v1894 = vmul.f32 %v1834, 1.442695
        %v1895 = vpow.pop %v1894
        %v1896 = vmul.f32 %v1835, 1.442695
        %v1897 = vpow.pop %v1896
        %v1898 = vmul.f32 %v1836, 1.442695
        %v1899 = vpow.pop %v1898
        %v1900 = vmul.f32 %v1837, 1.442695
        %v1901 = vpow.pop %v1900
        %v1902 = vadd.f32 %v1839, 1.0
        %v1903 = vadd.f32 %v1841, 1.0
        %v1904 = vadd.f32 %v1843, 1.0
        %v1905 = vadd.f32 %v1845, 1.0
        %v1906 = vadd.f32 %v1847, 1.0
        %v1907 = vadd.f32 %v1849, 1.0
        %v1908 = vadd.f32 %v1851, 1.0
        %v1909 = vadd.f32 %v1853, 1.0
        %v1910 = vadd.f32 %v1855, 1.0
        %v1911 = vadd.f32 %v1857, 1.0
        %v1912 = vadd.f32 %v1859, 1.0
        %v1913 = vadd.f32 %v1861, 1.0
        %v1914 = vadd.f32 %v1863, 1.0
        %v1915 = vadd.f32 %v1865, 1.0
        %v1916 = vadd.f32 %v1867, 1.0
        %v1917 = vadd.f32 %v1869, 1.0
        %v1918 = vadd.f32 %v1871, 1.0
        %v1919 = vadd.f32 %v1873, 1.0
        %v1920 = vadd.f32 %v1875, 1.0
        %v1921 = vadd.f32 %v1877, 1.0
        %v1922 = vadd.f32 %v1879, 1.0
        %v1923 = vadd.f32 %v1881, 1.0
        %v1924 = vadd.f32 %v1883, 1.0
        %v1925 = vadd.f32 %v1885, 1.0
        %v1926 = vadd.f32 %v1887, 1.0
        %v1927 = vadd.f32 %v1889, 1.0
        %v1928 = vadd.f32 %v1891, 1.0
        %v1929 = vadd.f32 %v1893, 1.0
        %v1930 = vadd.f32 %v1895, 1.0
        %v1931 = vadd.f32 %v1897, 1.0
        %v1932 = vadd.f32 %v1899, 1.0
        %v1933 = vadd.f32 %v1901, 1.0
        %v1934 = vrcp.pop %v1902
        %v1935 = vrcp.pop %v1903
        %v1936 = vrcp.pop %v1904
        %v1937 = vrcp.pop %v1905
        %v1938 = vrcp.pop %v1906
        %v1939 = vrcp.pop %v1907
        %v1940 = vrcp.pop %v1908
        %v1941 = vrcp.pop %v1909
        %v1942 = vrcp.pop %v1910
        %v1943 = vrcp.pop %v1911
        %v1944 = vrcp.pop %v1912
        %v1945 = vrcp.pop %v1913
        %v1946 = vrcp.pop %v1914
        %v1947 = vrcp.pop %v1915
        %v1948 = vrcp.pop %v1916
        %v1949 = vrcp.pop %v1917
        %v1950 = vrcp.pop %v1918
        %v1951 = vrcp.pop %v1919
        %v1952 = vrcp.pop %v1920
        %v1953 = vrcp.pop %v1921
        %v1954 = vrcp.pop %v1922
        %v1955 = vrcp.pop %v1923
        %v1956 = vrcp.pop %v1924
        %v1957 = vrcp.pop %v1925
        %v1958 = vrcp.pop %v1926
        %v1959 = vrcp.pop %v1927
        %v1960 = vrcp.pop %v1928
        %v1961 = vrcp.pop %v1929
        %v1962 = vrcp.pop %v1930
        %v1963 = vrcp.pop %v1931
        %v1964 = vrcp.pop %v1932
        %v1965 = vrcp.pop %v1933
        %v1966 = vmul.f32 %v1774, %v1934
        %v1967 = vmul.f32 %v1775, %v1935
        %v1968 = vmul.f32 %v1776, %v1936
        %v1969 = vmul.f32 %v1777, %v1937
        %v1970 = vmul.f32 %v1778, %v1938
        %v1971 = vmul.f32 %v1779, %v1939
        %v1972 = vmul.f32 %v1780, %v1940
        %v1973 = vmul.f32 %v1781, %v1941
        %v1974 = vmul.f32 %v1782, %v1942
        %v1975 = vmul.f32 %v1783, %v1943
        %v1976 = vmul.f32 %v1784, %v1944
        %v1977 = vmul.f32 %v1785, %v1945
        %v1978 = vmul.f32 %v1786, %v1946
        %v1979 = vmul.f32 %v1787, %v1947
        %v1980 = vmul.f32 %v1788, %v1948
        %v1981 = vmul.f32 %v1789, %v1949
        %v1982 = vmul.f32 %v1790, %v1950
        %v1983 = vmul.f32 %v1791, %v1951
        %v1984 = vmul.f32 %v1792, %v1952
        %v1985 = vmul.f32 %v1793, %v1953
        %v1986 = vmul.f32 %v1794, %v1954
        %v1987 = vmul.f32 %v1795, %v1955
        %v1988 = vmul.f32 %v1796, %v1956
        %v1989 = vmul.f32 %v1797, %v1957
        %v1990 = vmul.f32 %v1798, %v1958
        %v1991 = vmul.f32 %v1799, %v1959
        %v1992 = vmul.f32 %v1800, %v1960
        %v1993 = vmul.f32 %v1801, %v1961
        %v1994 = vmul.f32 %v1802, %v1962
        %v1995 = vmul.f32 %v1803, %v1963
        %v1996 = vmul.f32 %v1804, %v1964
        %v1997 = vmul.f32 %v1805, %v1965
        %v1998 = vadd.f32 %v1966, %v1967
        %v1999 = vadd.f32 %v1998, %v1968
        %v2000 = vadd.f32 %v1999, %v1969
        %v2001 = vadd.f32 %v2000, %v1970
        %v2002 = vadd.f32 %v2001, %v1971
        %v2003 = vadd.f32 %v2002, %v1972
        %v2004 = vadd.f32 %v2003, %v1973
        %v2005 = vadd.f32 %v2004, %v1974
        %v2006 = vadd.f32 %v2005, %v1975
        %v2007 = vadd.f32 %v2006, %v1976
        %v2008 = vadd.f32 %v2007, %v1977
        %v2009 = vadd.f32 %v2008, %v1978
        %v2010 = vadd.f32 %v2009, %v1979
        %v2011 = vadd.f32 %v2010, %v1980
        %v2012 = vadd.f32 %v2011, %v1981
        %v2013 = vadd.f32 %v2012, %v1982
        %v2014 = vadd.f32 %v2013, %v1983
        %v2015 = vadd.f32 %v2014, %v1984
        %v2016 = vadd.f32 %v2015, %v1985
        %v2017 = vadd.f32 %v2016, %v1986
        %v2018 = vadd.f32 %v2017, %v1987
        %v2019 = vadd.f32 %v2018, %v1988
        %v2020 = vadd.f32 %v2019, %v1989
        %v2021 = vadd.f32 %v2020, %v1990
        %v2022 = vadd.f32 %v2021, %v1991
        %v2023 = vadd.f32 %v2022, %v1992
        %v2024 = vadd.f32 %v2023, %v1993
        %v2025 = vadd.f32 %v2024, %v1994
        %v2026 = vadd.f32 %v2025, %v1995
        %v2027 = vadd.f32 %v2026, %v1996
        %v2028 = vadd.f32 %v2027, %v1997
        %v2029 = vrot.slane %v2028, 4
        %v2030 = vadd.f32 %v2028, %v2029
        %v2031 = vrot.slane %v2030, 2
        %v2032 = vadd.f32 %v2030, %v2031
        %v2033 = vrot.slane %v2032, 1
        %v2034 = vadd.f32 %v2032, %v2033
        %v2035 = vmul.f32 %v2034, 0.00390625
        %v2036 = vld [vmem:[%s5] sm:$0xff]
        %v2037 = vld [vmem:[%s5 + $0x8] sm:$0xff]
        %v2038 = vld [vmem:[%s5 + $0x10] sm:$0xff]
        %v2039 = vld [vmem:[%s5 + $0x18] sm:$0xff]
        %v2040 = vld [vmem:[%s5 + $0x20] sm:$0xff]
        %v2041 = vld [vmem:[%s5 + $0x28] sm:$0xff]
        %v2042 = vld [vmem:[%s5 + $0x30] sm:$0xff]
        %v2043 = vld [vmem:[%s5 + $0x38] sm:$0xff]
        %v2044 = vld [vmem:[%s5 + $0x40] sm:$0xff]
        %v2045 = vld [vmem:[%s5 + $0x48] sm:$0xff]
        %v2046 = vld [vmem:[%s5 + $0x50] sm:$0xff]
        %v2047 = vld [vmem:[%s5 + $0x58] sm:$0xff]
        %v2048 = vld [vmem:[%s5 + $0x60] sm:$0xff]
        %v2049 = vld [vmem:[%s5 + $0x68] sm:$0xff]
        %v2050 = vld [vmem:[%s5 + $0x70] sm:$0xff]
        %v2051 = vld [vmem:[%s5 + $0x78] sm:$0xff]
        %v2052 = vld [vmem:[%s6] sm:$0x1]
        %2053 = vmatpush.msra.mxu0 %v2051
        %2054 = vmatpush.msra.mxu0 %v2050
        %2055 = vmatpush.msra.mxu0 %v2049
        %2056 = vmatpush.msra.mxu0 %v2048
        %2057 = vmatpush.msra.mxu0 %v2047
        %2058 = vmatpush.msra.mxu0 %v2046
        %2059 = vmatpush.msra.mxu0 %v2045
        %2060 = vmatpush.msra.mxu0 %v2044
        %2061 = vmatpush.msra.mxu0 %v2043
        %2062 = vmatpush.msra.mxu0 %v2042
        %2063 = vmatpush.msra.mxu0 %v2041
        %2064 = vmatpush.msra.mxu0 %v2040
        %2065 = vmatpush.msra.mxu0 %v2039
        %2066 = vmatpush.msra.mxu0 %v2038
        %2067 = vmatpush.msra.mxu0 %v2037
        %2068 = vmatpush.msra.mxu0 %v2036
        %2069 = vmatmul.f32.gmra.mxu0 %v2035
        %v2070 = vpop.f32.mrf.mxu0
        %v2071 = vadd.f32 %v2052, %v2070
        %2072 = vdwg.mxu0
        %v2073 = vsub.f32 0.0, %v2071
        %v2074 = vmul.f32 %v2073, 1.442695
        %v2075 = vpow.pop %v2074
        %v2076 = vadd.f32 %v2075, 1.0
        %v2077 = vrcp.pop %v2076
        %v2078 = vmul.f32 %v2071, %v2077
        %v2079 = vld [vmem:[%s7] sm:$0xff]
        %v2080 = vld [vmem:[%s8] sm:$0x1]
        %vm2081 = vcmask 64512
        %v2083 = vsel %vm2081, %v2078, 0
        %2085 = vmatpush.msra.mxu0 0.0
        %2086 = vmatpush.msra.mxu0 0.0
        %2087 = vmatpush.msra.mxu0 0.0
        %2088 = vmatpush.msra.mxu0 0.0
        %2089 = vmatpush.msra.mxu0 0.0
        %2090 = vmatpush.msra.mxu0 0.0
        %2091 = vmatpush.msra.mxu0 0.0
        %2092 = vmatpush.msra.mxu0 0.0
        %2093 = vmatpush.msra.mxu0 0.0
        %2094 = vmatpush.msra.mxu0 0.0
        %2095 = vmatpush.msra.mxu0 0.0
        %2096 = vmatpush.msra.mxu0 0.0
        %2097 = vmatpush.msra.mxu0 0.0
        %2098 = vmatpush.msra.mxu0 0.0
        %2099 = vmatpush.msra.mxu0 0.0
        %2100 = vmatpush.msra.mxu0 %v2079
        %2101 = vmatmul.f32.gmra.mxu0 %v2083
        %v2102 = vpop.f32.mrf.mxu0
        %v2103 = vadd.f32 %v2080, %v2102
        %2104 = vdwg.mxu0
        %v2105 = vsub.f32 0.0, %v2103
        %v2106 = vmul.f32 %v2105, 1.442695
        %v2107 = vpow.pop %v2106
        %v2108 = vadd.f32 %v2107, 1.0
        %v2109 = vrcp.pop %v2108
        %v2110 = vperm.slane %v2109, 0
        %v2111 = vmul.f32 %v1966, %v2110
        %v2112 = vmul.f32 %v1967, %v2110
        %v2113 = vmul.f32 %v1968, %v2110
        %v2114 = vmul.f32 %v1969, %v2110
        %v2115 = vmul.f32 %v1970, %v2110
        %v2116 = vmul.f32 %v1971, %v2110
        %v2117 = vmul.f32 %v1972, %v2110
        %v2118 = vmul.f32 %v1973, %v2110
        %v2119 = vmul.f32 %v1974, %v2110
        %v2120 = vmul.f32 %v1975, %v2110
        %v2121 = vmul.f32 %v1976, %v2110
        %v2122 = vmul.f32 %v1977, %v2110
        %v2123 = vmul.f32 %v1978, %v2110
        %v2124 = vmul.f32 %v1979, %v2110
        %v2125 = vmul.f32 %v1980, %v2110
        %v2126 = vmul.f32 %v1981, %v2110
        %v2127 = vmul.f32 %v1982, %v2110
        %v2128 = vmul.f32 %v1983, %v2110
        %v2129 = vmul.f32 %v1984, %v2110
        %v2130 = vmul.f32 %v1985, %v2110
        %v2131 = vmul.f32 %v1986, %v2110
        %v2132 = vmul.f32 %v1987, %v2110
        %v2133 = vmul.f32 %v1988, %v2110
        %v2134 = vmul.f32 %v1989, %v2110
        %v2135 = vmul.f32 %v1990, %v2110
        %v2136 = vmul.f32 %v1991, %v2110
        %v2137 = vmul.f32 %v1992, %v2110
        %v2138 = vmul.f32 %v1993, %v2110
        %v2139 = vmul.f32 %v1994, %v2110
        %v2140 = vmul.f32 %v1995, %v2110
        %v2141 = vmul.f32 %v1996, %v2110
        %v2142 = vmul.f32 %v1997, %v2110
        %v2143 = vpack.c.bf16 %v2112, %v2111
        %v2144 = vpack.c.bf16 %v2114, %v2113
        %v2145 = vpack.c.bf16 %v2116, %v2115
        %v2146 = vpack.c.bf16 %v2118, %v2117
        %v2147 = vpack.c.bf16 %v2120, %v2119
        %v2148 = vpack.c.bf16 %v2122, %v2121
        %v2149 = vpack.c.bf16 %v2124, %v2123
        %v2150 = vpack.c.bf16 %v2126, %v2125
        %v2151 = vpack.c.bf16 %v2128, %v2127
        %v2152 = vpack.c.bf16 %v2130, %v2129
        %v2153 = vpack.c.bf16 %v2132, %v2131
        %v2154 = vpack.c.bf16 %v2134, %v2133
        %v2155 = vpack.c.bf16 %v2136, %v2135
        %v2156 = vpack.c.bf16 %v2138, %v2137
        %v2157 = vpack.c.bf16 %v2140, %v2139
        %v2158 = vpack.c.bf16 %v2142, %v2141
        %v2159 = vld [vmem:[%s9] sm:$0xf]
        %v2160 = vld [vmem:[%s9 + $0x4] sm:$0xf]
        %v2161 = vld [vmem:[%s9 + $0x8] sm:$0xf]
        %v2162 = vld [vmem:[%s9 + $0xc] sm:$0xf]
        %v2163 = vld [vmem:[%s9 + $0x10] sm:$0xf]
        %v2164 = vld [vmem:[%s9 + $0x14] sm:$0xf]
        %v2165 = vld [vmem:[%s9 + $0x18] sm:$0xf]
        %v2166 = vld [vmem:[%s9 + $0x1c] sm:$0xf]
        %v2167 = vld [vmem:[%s9 + $0x20] sm:$0xf]
        %v2168 = vld [vmem:[%s9 + $0x24] sm:$0xf]
        %v2169 = vld [vmem:[%s9 + $0x28] sm:$0xf]
        %v2170 = vld [vmem:[%s9 + $0x2c] sm:$0xf]
        %v2171 = vld [vmem:[%s9 + $0x30] sm:$0xf]
        %v2172 = vld [vmem:[%s9 + $0x34] sm:$0xf]
        %v2173 = vld [vmem:[%s9 + $0x38] sm:$0xf]
        %v2174 = vld [vmem:[%s9 + $0x3c] sm:$0xf]
        %v2175 = vld [vmem:[%s10] sm:$0x1]
        %v2177 = vperm.slane %v2175, 0
        %v2195 = vunpack.c.l.b16 %v2159
        %v2196 = vunpack.c.l.b16 %v2160
        %v2197 = vunpack.c.l.b16 %v2161
        %v2198 = vunpack.c.l.b16 %v2162
        %v2199 = vunpack.c.l.b16 %v2163
        %v2200 = vunpack.c.l.b16 %v2164
        %v2201 = vunpack.c.l.b16 %v2165
        %v2202 = vunpack.c.l.b16 %v2166
        %v2203 = vunpack.c.l.b16 %v2167
        %v2204 = vunpack.c.l.b16 %v2168
        %v2205 = vunpack.c.l.b16 %v2169
        %v2206 = vunpack.c.l.b16 %v2170
        %v2207 = vunpack.c.l.b16 %v2171
        %v2208 = vunpack.c.l.b16 %v2172
        %v2209 = vunpack.c.l.b16 %v2173
        %v2210 = vunpack.c.l.b16 %v2174
        %v2211 = vpack.c.b16 %v2196, %v2195
        %v2212 = vpack.c.b16 %v2198, %v2197
        %v2213 = vpack.c.b16 %v2200, %v2199
        %v2214 = vpack.c.b16 %v2202, %v2201
        %v2215 = vpack.c.b16 %v2204, %v2203
        %v2216 = vpack.c.b16 %v2206, %v2205
        %v2217 = vpack.c.b16 %v2208, %v2207
        %v2218 = vpack.c.b16 %v2210, %v2209
        %2227 = vmatpush.bf16.msra.mxu0 %v2218
        %2228 = vmatpush.bf16.msra.mxu0 %v2217
        %2229 = vmatpush.bf16.msra.mxu0 %v2216
        %2230 = vmatpush.bf16.msra.mxu0 %v2215
        %2231 = vmatpush.bf16.msra.mxu0 %v2214
        %2232 = vmatpush.bf16.msra.mxu0 %v2213
        %2233 = vmatpush.bf16.msra.mxu0 %v2212
        %2234 = vmatpush.bf16.msra.mxu0 %v2211
        %2235 = vmatmul.bf16.gmra.mxu0 %v2143
        %v2236 = vpop.f32.mrf.mxu0
        %v2237 = vadd.f32 %v2177, %v2236
        %v2238 = vpop.f32.mrf.mxu0
        %v2239 = vadd.f32 %v2177, %v2238
        %2240 = vmatmul.bf16.gmra.mxu0 %v2144
        %v2241 = vpop.f32.mrf.mxu0
        %v2242 = vadd.f32 %v2177, %v2241
        %v2243 = vpop.f32.mrf.mxu0
        %v2244 = vadd.f32 %v2177, %v2243
        %2245 = vmatmul.bf16.gmra.mxu0 %v2145
        %v2246 = vpop.f32.mrf.mxu0
        %v2247 = vadd.f32 %v2177, %v2246
        %v2248 = vpop.f32.mrf.mxu0
        %v2249 = vadd.f32 %v2177, %v2248
        %2250 = vmatmul.bf16.gmra.mxu0 %v2146
        %v2251 = vpop.f32.mrf.mxu0
        %v2252 = vadd.f32 %v2177, %v2251
        %v2253 = vpop.f32.mrf.mxu0
        %v2254 = vadd.f32 %v2177, %v2253
        %2255 = vmatmul.bf16.gmra.mxu0 %v2147
        %v2256 = vpop.f32.mrf.mxu0
        %v2257 = vadd.f32 %v2177, %v2256
        %v2258 = vpop.f32.mrf.mxu0
        %v2259 = vadd.f32 %v2177, %v2258
        %2260 = vmatmul.bf16.gmra.mxu0 %v2148
        %v2261 = vpop.f32.mrf.mxu0
        %v2262 = vadd.f32 %v2177, %v2261
        %v2263 = vpop.f32.mrf.mxu0
        %v2264 = vadd.f32 %v2177, %v2263
        %2265 = vmatmul.bf16.gmra.mxu0 %v2149
        %v2266 = vpop.f32.mrf.mxu0
        %v2267 = vadd.f32 %v2177, %v2266
        %v2268 = vpop.f32.mrf.mxu0
        %v2269 = vadd.f32 %v2177, %v2268
        %2270 = vmatmul.bf16.gmra.mxu0 %v2150
        %v2271 = vpop.f32.mrf.mxu0
        %v2272 = vadd.f32 %v2177, %v2271
        %v2273 = vpop.f32.mrf.mxu0
        %v2274 = vadd.f32 %v2177, %v2273
        %2275 = vmatmul.bf16.gmra.mxu0 %v2151
        %v2276 = vpop.f32.mrf.mxu0
        %v2277 = vadd.f32 %v2177, %v2276
        %v2278 = vpop.f32.mrf.mxu0
        %v2279 = vadd.f32 %v2177, %v2278
        %2280 = vmatmul.bf16.gmra.mxu0 %v2152
        %v2281 = vpop.f32.mrf.mxu0
        %v2282 = vadd.f32 %v2177, %v2281
        %v2283 = vpop.f32.mrf.mxu0
        %v2284 = vadd.f32 %v2177, %v2283
        %2285 = vmatmul.bf16.gmra.mxu0 %v2153
        %v2286 = vpop.f32.mrf.mxu0
        %v2287 = vadd.f32 %v2177, %v2286
        %v2288 = vpop.f32.mrf.mxu0
        %v2289 = vadd.f32 %v2177, %v2288
        %2290 = vmatmul.bf16.gmra.mxu0 %v2154
        %v2291 = vpop.f32.mrf.mxu0
        %v2292 = vadd.f32 %v2177, %v2291
        %v2293 = vpop.f32.mrf.mxu0
        %v2294 = vadd.f32 %v2177, %v2293
        %2295 = vmatmul.bf16.gmra.mxu0 %v2155
        %v2296 = vpop.f32.mrf.mxu0
        %v2297 = vadd.f32 %v2177, %v2296
        %v2298 = vpop.f32.mrf.mxu0
        %v2299 = vadd.f32 %v2177, %v2298
        %2300 = vmatmul.bf16.gmra.mxu0 %v2156
        %v2301 = vpop.f32.mrf.mxu0
        %v2302 = vadd.f32 %v2177, %v2301
        %v2303 = vpop.f32.mrf.mxu0
        %v2304 = vadd.f32 %v2177, %v2303
        %2305 = vmatmul.bf16.gmra.mxu0 %v2157
        %v2306 = vpop.f32.mrf.mxu0
        %v2307 = vadd.f32 %v2177, %v2306
        %v2308 = vpop.f32.mrf.mxu0
        %v2309 = vadd.f32 %v2177, %v2308
        %2310 = vmatmul.bf16.gmra.mxu0 %v2158
        %v2311 = vpop.f32.mrf.mxu0
        %v2312 = vadd.f32 %v2177, %v2311
        %v2313 = vpop.f32.mrf.mxu0
        %v2314 = vadd.f32 %v2177, %v2313
        %2315 = vdwg.mxu0
        %v2316 = vadd.f32 %v2237, %v408
        %v2317 = vadd.f32 %v2239, %v409
        %v2318 = vadd.f32 %v2242, %v410
        %v2319 = vadd.f32 %v2244, %v411
        %v2320 = vadd.f32 %v2247, %v412
        %v2321 = vadd.f32 %v2249, %v413
        %v2322 = vadd.f32 %v2252, %v414
        %v2323 = vadd.f32 %v2254, %v415
        %v2324 = vadd.f32 %v2257, %v416
        %v2325 = vadd.f32 %v2259, %v417
        %v2326 = vadd.f32 %v2262, %v418
        %v2327 = vadd.f32 %v2264, %v419
        %v2328 = vadd.f32 %v2267, %v420
        %v2329 = vadd.f32 %v2269, %v421
        %v2330 = vadd.f32 %v2272, %v422
        %v2331 = vadd.f32 %v2274, %v423
        %v2332 = vadd.f32 %v2277, %v424
        %v2333 = vadd.f32 %v2279, %v425
        %v2334 = vadd.f32 %v2282, %v426
        %v2335 = vadd.f32 %v2284, %v427
        %v2336 = vadd.f32 %v2287, %v428
        %v2337 = vadd.f32 %v2289, %v429
        %v2338 = vadd.f32 %v2292, %v430
        %v2339 = vadd.f32 %v2294, %v431
        %v2340 = vadd.f32 %v2297, %v432
        %v2341 = vadd.f32 %v2299, %v433
        %v2342 = vadd.f32 %v2302, %v434
        %v2343 = vadd.f32 %v2304, %v435
        %v2344 = vadd.f32 %v2307, %v436
        %v2345 = vadd.f32 %v2309, %v437
        %v2346 = vadd.f32 %v2312, %v438
        %v2347 = vadd.f32 %v2314, %v439
        %2348 = vst.msk [vmem:[%s406] sm:$0xff] %vm476, %v2316
        %2349 = vst.msk [vmem:[%s406 + $0x8] sm:$0xff] %vm476, %v2317
        %2350 = vst.msk [vmem:[%s406 + $0x10] sm:$0xff] %vm476, %v2318
        %2351 = vst.msk [vmem:[%s406 + $0x18] sm:$0xff] %vm476, %v2319
        %2352 = vst.msk [vmem:[%s406 + $0x20] sm:$0xff] %vm476, %v2320
        %2353 = vst.msk [vmem:[%s406 + $0x28] sm:$0xff] %vm476, %v2321
        %2354 = vst.msk [vmem:[%s406 + $0x30] sm:$0xff] %vm476, %v2322
        %2355 = vst.msk [vmem:[%s406 + $0x38] sm:$0xff] %vm476, %v2323
        %2356 = vst.msk [vmem:[%s406 + $0x40] sm:$0xff] %vm476, %v2324
        %2357 = vst.msk [vmem:[%s406 + $0x48] sm:$0xff] %vm476, %v2325
        %2358 = vst.msk [vmem:[%s406 + $0x50] sm:$0xff] %vm476, %v2326
        %2359 = vst.msk [vmem:[%s406 + $0x58] sm:$0xff] %vm476, %v2327
        %2360 = vst.msk [vmem:[%s406 + $0x60] sm:$0xff] %vm476, %v2328
        %2361 = vst.msk [vmem:[%s406 + $0x68] sm:$0xff] %vm476, %v2329
        %2362 = vst.msk [vmem:[%s406 + $0x70] sm:$0xff] %vm476, %v2330
        %2363 = vst.msk [vmem:[%s406 + $0x78] sm:$0xff] %vm476, %v2331
        %2364 = vst.msk [vmem:[%s406 + $0x80] sm:$0xff] %vm476, %v2332
        %2365 = vst.msk [vmem:[%s406 + $0x88] sm:$0xff] %vm476, %v2333
        %2366 = vst.msk [vmem:[%s406 + $0x90] sm:$0xff] %vm476, %v2334
        %2367 = vst.msk [vmem:[%s406 + $0x98] sm:$0xff] %vm476, %v2335
        %2368 = vst.msk [vmem:[%s406 + $0xa0] sm:$0xff] %vm476, %v2336
        %2369 = vst.msk [vmem:[%s406 + $0xa8] sm:$0xff] %vm476, %v2337
        %2370 = vst.msk [vmem:[%s406 + $0xb0] sm:$0xff] %vm476, %v2338
        %2371 = vst.msk [vmem:[%s406 + $0xb8] sm:$0xff] %vm476, %v2339
        %2372 = vst.msk [vmem:[%s406 + $0xc0] sm:$0xff] %vm476, %v2340
        %2373 = vst.msk [vmem:[%s406 + $0xc8] sm:$0xff] %vm476, %v2341
        %2374 = vst.msk [vmem:[%s406 + $0xd0] sm:$0xff] %vm476, %v2342
        %2375 = vst.msk [vmem:[%s406 + $0xd8] sm:$0xff] %vm476, %v2343
        %2376 = vst.msk [vmem:[%s406 + $0xe0] sm:$0xff] %vm476, %v2344
        %2377 = vst.msk [vmem:[%s406 + $0xe8] sm:$0xff] %vm476, %v2345
        %2378 = vst.msk [vmem:[%s406 + $0xf0] sm:$0xff] %vm476, %v2346
        %2379 = vst.msk [vmem:[%s406 + $0xf8] sm:$0xff] %vm476, %v2347
        %s2380 = sand.u32 %s272, 1
        %s2381 = scalar_lea.sflag [#allocation5], %s2380
        %s2382 = sand.u32 %s272, 1
        %s2383 = smul.addr %s2382, 256
        %s2384 = scalar_lea.vmem [#allocation6], %s2383
        // Predicated region
        $region69: #{tpu_custom_call.1} parent=63 // pred_check
          %p2385 = pneg %p282
        $region70: #{tpu_custom_call.1} parent=63 // pred_check_branch
          %2387 = sbr.rel (%p2385) target = $region72
        $region71: #{tpu_custom_call.1} parent=63 // pred_region
          %2389 = vsyncadd %s2381, 0
          %s2390 = smul.addr %s28, 32
          %s2391 = smul.addr %s2390, 8
          %s2392 = scalar_lea.hbm %s11, %s2391
          %s2393 = sshll.u32 %s2384, 4
          %s2394 = int_to_ptr.vmem [resolvable:$true] %s2393
          %s2395 = sshll.u32 %s2392, 4
          %s2396 = int_to_ptr.hbm [resolvable:$true] %s2395
          %2401 = dma.vmem_to_hbm [thread:$0]  %s2394, 4096, %s2396, %s2381, 128, 128, 8
        $region72: #{tpu_custom_call.1} parent=63 // pred_fallthru
          _
      $region64: #{tpu_custom_call.1} parent=5 // pred_fallthru
        _
      %p2402 = scmp.le.s32.totalorder 2, %s23
      // Predicated region
      $region73: #{tpu_custom_call.1} parent=5 // pred_check
        %p2403 = pneg %p2402
      $region74: #{tpu_custom_call.1} parent=5 // pred_check_branch
        %2405 = sbr.rel (%p2403) target = $region76
      $region75: #{tpu_custom_call.1} parent=5 // pred_region
        %s2406 = ssub.s32 %s23, 2
        // Predicated region
        $region77: #{tpu_custom_call.1} parent=75 // pred_check
          %p2407 = pneg %p288
        $region78: #{tpu_custom_call.1} parent=75 // pred_check_branch
          %2409 = sbr.rel (%p2407) target = $region80
        $region79: #{tpu_custom_call.1} parent=75 // pred_region
          %s2410 = sand.u32 %s273, 1
          %s2411 = scalar_lea.sflag [#allocation5], %s2410
          %s2412 = sand.u32 %s273, 1
          %s2413 = smul.addr %s2412, 256
          %s2414 = scalar_lea.vmem [#allocation6], %s2413
          %2416 = dma.done %s2411, 4096
        $region80: #{tpu_custom_call.1} parent=75 // pred_fallthru
          _
      $region76: #{tpu_custom_call.1} parent=5 // pred_fallthru
        _
    $region6: #{tpu_custom_call.1} parent=1 // loop_footer
      %s27 = sadd.s32 1, %s23
    $region7: #{tpu_custom_call.1} parent=1 // loop_footer_branch
      %22 = sbr.rel target = $region3
    $region8: #{tpu_custom_call.1} parent=1 // loop_exit
      _
    %2417 = vsyncpa [#allocation4], 1
    %s2418 = scalar_lea.sflag [#allocation4], 1
    %2419 = vsyncpa %s2418, 1
    %2420 = vsyncpa [#allocation5], 1
    %s2421 = scalar_lea.sflag [#allocation5], 1
    %2422 = vsyncpa %s2421, 1

</llo_original>
